<compile_context>
chip_gen: v5e
topology: v5e:2x2
jax: 0.10.0
libtpu: 0.0.40
codegen_flags: <defaults>
</compile_context>

<pallas_src>
import jax
import jax.numpy as jnp
from jax.experimental import pallas as pl
from jax.experimental.pallas import tpu as pltpu

# ----------------------------- config (small) -------------------------------
VOCAB = 128
HIDDEN = 64
INTER = 128
N_LAYERS = 2
N_HEADS = 4
N_KV_HEADS = 2
HEAD_DIM = 32
EPS = 1e-6
BATCH = 2
SEQ = 8
ROPE_THETA = 10000.0

QW = N_HEADS * HEAD_DIM          # 128  (query width)
KW = N_KV_HEADS * HEAD_DIM       # 64   (key/value width)
QKVW = QW + 2 * KW               # 256  (fused qkv width)
GROUP = N_HEADS // N_KV_HEADS    # GQA group size
M_ROWS = BATCH * SEQ             # 16   (batch folded into rows)


# --------------------------- in-kernel helpers -------------------------------
def _rmsnorm(x, w):
    # x: [M, W] f32, w: [1, W] f32
    var = jnp.mean(x * x, axis=-1, keepdims=True)
    return x * jax.lax.rsqrt(var + EPS) * w


def _head_norm_rope(x, bsum, w, rot_bf16, cos, sin):
    """Per-head RMSNorm over HEAD_DIM + rotate-half RoPE, kept lane-dense.

    x:        [M, W]  f32 (W = n_heads * HEAD_DIM, heads packed along lanes)
    bsum:     [W, W]  f32 block-diag ones -> per-head sum(x^2) broadcast (MXU)
    rot_bf16: [W, W]  bf16 block-diag [[0, I], [-I, 0]] -> rotate-half via MXU
    w:        [1, W]  per-head norm weight, tiled head-major
    cos/sin:  [M, W]
    """
    ssq = jnp.dot(x * x, bsum, preferred_element_type=jnp.float32)   # f32 acc
    xn = x * jax.lax.rsqrt(ssq * (1.0 / HEAD_DIM) + EPS) * w
    rotated = jnp.dot(xn.astype(jnp.bfloat16), rot_bf16,
                      preferred_element_type=jnp.float32)
    return xn * cos + rotated * sin


# ------------------------------ layer-loop kernel ----------------------------
def _qwen3_layers_kernel(
    x_ref, mask_ref, cos_q_ref, sin_q_ref, cos_k_ref, sin_k_ref,
    rot_q_ref, rot_k_ref, bsum_q_ref, bsum_k_ref,
    norms_ref, wqkv_ref, wo_ref, wgu_ref, wd_ref,
    h_out_ref, x_state,
):
    l = pl.program_id(0)
    last = pl.num_programs(0) - 1

    @pl.when(l == 0)
    def _init():
        x_state[...] = x_ref[...]

    x = x_state[...]                                   # [M, HIDDEN] f32 residual

    # packed per-layer norm vectors: one (8,128) block per layer
    norms = norms_ref[0]                               # [8, 128] f32
    in_ln = norms[0:1, 0:HIDDEN]
    post_ln = norms[1:2, 0:HIDDEN]
    # NOTE: with real Qwen3 checkpoints the per-head [HEAD_DIM] q/k norm weight
    # must be tiled head-major to match the qkv lane layout.
    q_norm = norms[2:3, 0:QW]
    k_norm = norms[3:4, 0:KW]

    # ---------------- attention block ----------------
    xn = _rmsnorm(x, in_ln)
    qkv = jnp.dot(xn.astype(jnp.bfloat16), wqkv_ref[0],
                  preferred_element_type=jnp.float32)  # [M, QKVW] f32
    q = qkv[:, :QW]
    k = qkv[:, QW:QW + KW]
    v = qkv[:, QW + KW:]

    q = _head_norm_rope(q, bsum_q_ref[...], q_norm, rot_q_ref[...],
                        cos_q_ref[...], sin_q_ref[...])
    k = _head_norm_rope(k, bsum_k_ref[...], k_norm, rot_k_ref[...],
                        cos_k_ref[...], sin_k_ref[...])
    q = q * (1.0 / (HEAD_DIM ** 0.5))

    # Head-batched attention: build [H, M, D] operands (leading-dim stack of
    # static lane slices; GQA repetition folded into the stacking order).
    qh = jnp.stack(
        [q[:, h * HEAD_DIM:(h + 1) * HEAD_DIM] for h in range(N_HEADS)],
        axis=0).astype(jnp.bfloat16)                   # [H, M, D]
    kh = jnp.stack(
        [k[:, (h // GROUP) * HEAD_DIM:((h // GROUP) + 1) * HEAD_DIM]
         for h in range(N_HEADS)], axis=0).astype(jnp.bfloat16)
    vh = jnp.stack(
        [v[:, (h // GROUP) * HEAD_DIM:((h // GROUP) + 1) * HEAD_DIM]
         for h in range(N_HEADS)], axis=0).astype(jnp.bfloat16)

    # QK^T with head as batch dim.
    s = jax.lax.dot_general(qh, kh, (((2,), (2,)), ((0,), (0,))),
                            preferred_element_type=jnp.float32)      # [H, M, M]
    s = s + mask_ref[...][None, :, :]                  # precomputed additive mask
    m = jnp.max(s, axis=-1, keepdims=True)
    p = jnp.exp(s - m)
    denom = jnp.sum(p, axis=-1, keepdims=True)
    p = p * pl.reciprocal(denom, approx=True)

    # PV with head as batch dim.
    o = jax.lax.dot_general(p.astype(jnp.bfloat16), vh,
                            (((2,), (1,)), ((0,), (0,))),
                            preferred_element_type=jnp.float32)      # [H, M, D]

    # Per-head O-projection, summed over heads (no lane concatenate).
    delta = jax.lax.dot_general(o.astype(jnp.bfloat16), wo_ref[0],
                                (((2,), (1,)), ((0,), (0,))),
                                preferred_element_type=jnp.float32)  # [H, M, HID]
    x = x + jnp.sum(delta, axis=0)

    # ---------------- MLP block (fused SwiGLU) ----------------
    xn = _rmsnorm(x, post_ln)
    gu = jnp.dot(xn.astype(jnp.bfloat16), wgu_ref[0],
                 preferred_element_type=jnp.float32)   # [M, 2*INTER]
    gate = gu[:, :INTER]
    up = gu[:, INTER:]
    act = gate * (1.0 / (1.0 + jnp.exp(-gate))) * up   # SiLU(gate) * up, f32
    x = x + jnp.dot(act.astype(jnp.bfloat16), wd_ref[0],
                    preferred_element_type=jnp.float32)

    x_state[...] = x

    @pl.when(l == last)
    def _finalize():
        h_out_ref[...] = x


# ------------------------------ lm-head kernel --------------------------------
def _lm_head_kernel(h_ref, final_ln_ref, w_ref, logits_ref):
    xf = _rmsnorm(h_ref[...], final_ln_ref[...])
    logits_ref[...] = jnp.dot(xf.astype(jnp.bfloat16), w_ref[...],
                              preferred_element_type=jnp.float32)


# ------------------------------- JAX glue ------------------------------------
def _rope_tables():
    half = HEAD_DIM // 2
    pos = jnp.arange(SEQ, dtype=jnp.float32)
    inv_freq = 1.0 / (ROPE_THETA ** (jnp.arange(half, dtype=jnp.float32) / half))
    freqs = pos[:, None] * inv_freq[None, :]           # [S, half]
    cos = jnp.concatenate([jnp.cos(freqs), jnp.cos(freqs)], axis=-1)  # [S, D]
    sin = jnp.concatenate([jnp.sin(freqs), jnp.sin(freqs)], axis=-1)  # [S, D]
    return cos, sin


def _rotate_half_matrix():
    # x @ R == concat([-x[half:], x[:half]])   (rotate-half convention)
    half = HEAD_DIM // 2
    eye = jnp.eye(half, dtype=jnp.float32)
    zeros = jnp.zeros((half, half), jnp.float32)
    top = jnp.concatenate([zeros, eye], axis=1)
    bot = jnp.concatenate([-eye, zeros], axis=1)
    return jnp.concatenate([top, bot], axis=0)         # [D, D]


def init_params(key):
    def w(k, shape, scale=0.02):
        return scale * jax.random.normal(k, shape, dtype=jnp.float32)

    keys = jax.random.split(key, 2 + N_LAYERS)
    embed = w(keys[0], (VOCAB, HIDDEN))
    lm_head = w(keys[1], (HIDDEN, VOCAB)).astype(jnp.bfloat16)

    wqkv, wo, wgu, wd = [], [], [], []
    for li in range(N_LAYERS):
        lk = jax.random.split(keys[2 + li], 7)
        wq = w(lk[0], (HIDDEN, QW))
        wk = w(lk[1], (HIDDEN, KW))
        wv = w(lk[2], (HIDDEN, KW))
        wqkv.append(jnp.concatenate([wq, wk, wv], axis=1))             # [H, QKVW]
        # O-projection stored per head: [N_HEADS, HEAD_DIM, HIDDEN]
        wo.append(w(lk[3], (QW, HIDDEN)).reshape(N_HEADS, HEAD_DIM, HIDDEN))
        wgu.append(jnp.concatenate([w(lk[4], (HIDDEN, INTER)),
                                    w(lk[5], (HIDDEN, INTER))], axis=1))
        wd.append(w(lk[6], (INTER, HIDDEN)))

    return {
        "embed": embed,
        "lm_head": lm_head,                               # [H, VOCAB] bf16
        "final_ln": jnp.ones((1, HIDDEN), jnp.float32),
        "input_ln": jnp.ones((N_LAYERS, HIDDEN), jnp.float32),
        "post_ln": jnp.ones((N_LAYERS, HIDDEN), jnp.float32),
        "q_norm": jnp.ones((N_LAYERS, QW), jnp.float32),  # per-head, head-major
        "k_norm": jnp.ones((N_LAYERS, KW), jnp.float32),
        "wqkv": jnp.stack(wqkv).astype(jnp.bfloat16),     # [L, H, QKVW]
        "wo": jnp.stack(wo).astype(jnp.bfloat16),         # [L, NH, D, H]
        "wgu": jnp.stack(wgu).astype(jnp.bfloat16),       # [L, H, 2*I]
        "wd": jnp.stack(wd).astype(jnp.bfloat16),         # [L, I, H]
    }


def qwen3_forward(params, input_ids):
    B, S = input_ids.shape
    assert B == BATCH and S == SEQ
    M = B * S

    # TODO(synk): token-embedding gather kept in plain JAX (no clean small-Pallas gather).
    x = jnp.take(params["embed"], input_ids.reshape(-1), axis=0)       # [M, H] f32

    # RoPE tables (batch folded into rows: position pattern repeats per batch).
    cos_h, sin_h = _rope_tables()
    cos_q = jnp.tile(cos_h, (B, N_HEADS))                              # [M, QW]
    sin_q = jnp.tile(sin_h, (B, N_HEADS))
    cos_k = jnp.tile(cos_h, (B, N_KV_HEADS))                           # [M, KW]
    sin_k = jnp.tile(sin_h, (B, N_KV_HEADS))

    # Structural block-diagonal matrices (built once, resident constants).
    r1 = _rotate_half_matrix()
    ones_d = jnp.ones((HEAD_DIM, HEAD_DIM), jnp.float32)
    rot_q = jnp.kron(jnp.eye(N_HEADS, dtype=jnp.float32), r1).astype(jnp.bfloat16)
    rot_k = jnp.kron(jnp.eye(N_KV_HEADS, dtype=jnp.float32), r1).astype(jnp.bfloat16)
    bsum_q = jnp.kron(jnp.eye(N_HEADS, dtype=jnp.float32), ones_d)     # [QW, QW]
    bsum_k = jnp.kron(jnp.eye(N_KV_HEADS, dtype=jnp.float32), ones_d)  # [KW, KW]

    # Additive attention mask: causal within each sequence, blocked across batch.
    ridx = jnp.arange(M)
    bid = ridx // S
    pos = ridx % S
    allowed = (bid[:, None] == bid[None, :]) & (pos[None, :] <= pos[:, None])
    mask = jnp.where(allowed, 0.0, -1e30).astype(jnp.float32)          # [M, M]

    # Pack the four small per-layer norm vectors into one (8,128) slab per layer.
    norms = jnp.zeros((N_LAYERS, 8, 128), jnp.float32)
    norms = norms.at[:, 0, :HIDDEN].set(params["input_ln"])
    norms = norms.at[:, 1, :HIDDEN].set(params["post_ln"])
    norms = norms.at[:, 2, :QW].set(params["q_norm"])
    norms = norms.at[:, 3, :KW].set(params["k_norm"])

    const2 = lambda l: (0, 0)
    per_layer3 = lambda l: (l, 0, 0)

    hidden = pl.pallas_call(
        _qwen3_layers_kernel,
        out_shape=jax.ShapeDtypeStruct((M, HIDDEN), jnp.float32),
        grid=(N_LAYERS,),
        in_specs=[
            pl.BlockSpec((M, HIDDEN), const2),                         # x
            pl.BlockSpec((M, M), const2),                              # mask
            pl.BlockSpec((M, QW), const2),                             # cos_q
            pl.BlockSpec((M, QW), const2),                             # sin_q
            pl.BlockSpec((M, KW), const2),                             # cos_k
            pl.BlockSpec((M, KW), const2),                             # sin_k
            pl.BlockSpec((QW, QW), const2),                            # rot_q (bf16)
            pl.BlockSpec((KW, KW), const2),                            # rot_k (bf16)
            pl.BlockSpec((QW, QW), const2),                            # bsum_q
            pl.BlockSpec((KW, KW), const2),                            # bsum_k
            pl.BlockSpec((1, 8, 128), per_layer3),                     # packed norms
            pl.BlockSpec((1, HIDDEN, QKVW), per_layer3),               # wqkv
            pl.BlockSpec((1, N_HEADS, HEAD_DIM, HIDDEN),
                         lambda l: (l, 0, 0, 0)),                      # wo (per-head)
            pl.BlockSpec((1, HIDDEN, 2 * INTER), per_layer3),          # wgu
            pl.BlockSpec((1, INTER, HIDDEN), per_layer3),              # wd
        ],
        out_specs=pl.BlockSpec((M, HIDDEN), const2),
        scratch_shapes=[pltpu.VMEM((M, HIDDEN), jnp.float32)],
        compiler_params=pltpu.CompilerParams(
            dimension_semantics=("arbitrary",),
            vmem_limit_bytes=32 * 1024 * 1024),
    )(x, mask, cos_q, sin_q, cos_k, sin_k, rot_q, rot_k, bsum_q, bsum_k,
      norms, params["wqkv"], params["wo"], params["wgu"], params["wd"])

    # Final RMSNorm + LM head in a separate single-block call (lm_head never
    # lives in the layer-loop working set).
    # TODO(synk): at real vocab sizes (~150K) this needs a vocab-tiled grid axis.
    logits = pl.pallas_call(
        _lm_head_kernel,
        out_shape=jax.ShapeDtypeStruct((M, VOCAB), jnp.float32),
    )(hidden, params["final_ln"], params["lm_head"])

    return logits.reshape(B, S, VOCAB)


if __name__ == "__main__":
    key = jax.random.PRNGKey(0)
    pkey, ikey = jax.random.split(key)
    params = init_params(pkey)
    input_ids = jax.random.randint(ikey, (BATCH, SEQ), 0, VOCAB, dtype=jnp.int32)

    logits = jax.jit(qwen3_forward)(params, input_ids)
    logits = jax.block_until_ready(logits)

    assert logits.shape == (BATCH, SEQ, VOCAB)
    assert logits.dtype == jnp.float32
    assert bool(jnp.all(jnp.isfinite(logits)))
    print("KERNEL_OK")
</pallas_src>

<mosaic_0001>
module attributes {stable_mosaic.version = 11 : i64} {
  func.func @_lm_head_kernel(%arg0: memref<16x64xf32, #tpu.memory_space<vmem>>, %arg1: memref<1x64xf32, #tpu.memory_space<vmem>>, %arg2: memref<64x128xbf16, #tpu.memory_space<vmem>>, %arg3: memref<16x128xf32, #tpu.memory_space<vmem>>) attributes {dimension_semantics = [], scalar_prefetch = 0 : i64, scratch_operands = 0 : i64, tpu.core_type = #tpu.core_type<tc>} {
    %c0 = arith.constant 0 : index
    %c0_0 = arith.constant 0 : index
    %0 = vector.load %arg0[%c0, %c0_0] : memref<16x64xf32, #tpu.memory_space<vmem>>, vector<16x64xf32>
    %c0_1 = arith.constant 0 : index
    %c0_2 = arith.constant 0 : index
    %1 = vector.load %arg1[%c0_1, %c0_2] : memref<1x64xf32, #tpu.memory_space<vmem>>, vector<1x64xf32>
    %2 = arith.mulf %0, %0 : vector<16x64xf32>
    %cst = arith.constant dense<0.000000e+00> : vector<16xf32>
    %3 = vector.multi_reduction <add>, %2, %cst [1] : vector<16x64xf32> to vector<16xf32>
    %4 = vector.shape_cast %3 : vector<16xf32> to vector<16x1xf32>
    %cst_3 = arith.constant 6.400000e+01 : f32
    %5 = vector.broadcast %cst_3 : f32 to vector<16x1xf32>
    %6 = arith.divf %4, %5 : vector<16x1xf32>
    %cst_4 = arith.constant 9.99999997E-7 : f32
    %7 = vector.broadcast %cst_4 : f32 to vector<16x1xf32>
    %8 = arith.addf %6, %7 : vector<16x1xf32>
    %9 = math.rsqrt %8 : vector<16x1xf32>
    %10 = vector.broadcast %9 : vector<16x1xf32> to vector<16x64xf32>
    %11 = arith.mulf %0, %10 : vector<16x64xf32>
    %12 = vector.broadcast %1 : vector<1x64xf32> to vector<16x64xf32>
    %13 = arith.mulf %11, %12 : vector<16x64xf32>
    %14 = arith.truncf %13 : vector<16x64xf32> to vector<16x64xbf16>
    %c0_5 = arith.constant 0 : index
    %c0_6 = arith.constant 0 : index
    %15 = vector.load %arg2[%c0_5, %c0_6] : memref<64x128xbf16, #tpu.memory_space<vmem>>, vector<64x128xbf16>
    %cst_7 = arith.constant dense<0.000000e+00> : vector<16x128xf32>
    %16 = tpu.matmul %14, %15, %cst_7 {dimension_numbers = #tpu.dot_dimension_numbers<[1], [0], [0], [1], [0, 0, 1, 1], [], []>} : vector<16x64xbf16>, vector<64x128xbf16>, vector<16x128xf32> -> vector<16x128xf32>
    %c0_8 = arith.constant 0 : index
    %c0_9 = arith.constant 0 : index
    %17 = vector.load %arg3[%c0_8, %c0_9] : memref<16x128xf32, #tpu.memory_space<vmem>>, vector<16x128xf32>
    tpu.vector_store %arg3[%c0_8, %c0_9], %16 {strides = array<i32>} : memref<16x128xf32, #tpu.memory_space<vmem>>, vector<16x128xf32>,
    return
  }
}

module attributes {stable_mosaic.version = 11 : i64} {
  func.func @_qwen3_layers_kernel(%arg0: i32, %arg1: memref<16x64xf32, #tpu.memory_space<vmem>>, %arg2: memref<16x16xf32, #tpu.memory_space<vmem>>, %arg3: memref<16x128xf32, #tpu.memory_space<vmem>>, %arg4: memref<16x128xf32, #tpu.memory_space<vmem>>, %arg5: memref<16x64xf32, #tpu.memory_space<vmem>>, %arg6: memref<16x64xf32, #tpu.memory_space<vmem>>, %arg7: memref<128x128xbf16, #tpu.memory_space<vmem>>, %arg8: memref<64x64xbf16, #tpu.memory_space<vmem>>, %arg9: memref<128x128xf32, #tpu.memory_space<vmem>>, %arg10: memref<64x64xf32, #tpu.memory_space<vmem>>, %arg11: memref<1x8x128xf32, #tpu.memory_space<vmem>>, %arg12: memref<1x64x256xbf16, #tpu.memory_space<vmem>>, %arg13: memref<1x4x32x64xbf16, #tpu.memory_space<vmem>>, %arg14: memref<1x64x256xbf16, #tpu.memory_space<vmem>>, %arg15: memref<1x128x64xbf16, #tpu.memory_space<vmem>>, %arg16: memref<16x64xf32, #tpu.memory_space<vmem>>, %arg17: memref<16x64xf32, #tpu.memory_space<vmem>>) attributes {dimension_semantics = [#tpu.dimension_semantics<arbitrary>], iteration_bounds = array<i64: 2>, scalar_prefetch = 0 : i64, scratch_operands = 1 : i64, tpu.core_type = #tpu.core_type<tc>, window_params = [{pipeline_mode = #tpu.pipeline_mode<synchronous>, transform_indices = @transform_0, window_bounds = array<i64: 16, 64>}, {pipeline_mode = #tpu.pipeline_mode<synchronous>, transform_indices = @transform_1, window_bounds = array<i64: 16, 16>}, {pipeline_mode = #tpu.pipeline_mode<synchronous>, transform_indices = @transform_2, window_bounds = array<i64: 16, 128>}, {pipeline_mode = #tpu.pipeline_mode<synchronous>, transform_indices = @transform_3, window_bounds = array<i64: 16, 128>}, {pipeline_mode = #tpu.pipeline_mode<synchronous>, transform_indices = @transform_4, window_bounds = array<i64: 16, 64>}, {pipeline_mode = #tpu.pipeline_mode<synchronous>, transform_indices = @transform_5, window_bounds = array<i64: 16, 64>}, {pipeline_mode = #tpu.pipeline_mode<synchronous>, transform_indices = @transform_6, window_bounds = array<i64: 128, 128>}, {pipeline_mode = #tpu.pipeline_mode<synchronous>, transform_indices = @transform_7, window_bounds = array<i64: 64, 64>}, {pipeline_mode = #tpu.pipeline_mode<synchronous>, transform_indices = @transform_8, window_bounds = array<i64: 128, 128>}, {pipeline_mode = #tpu.pipeline_mode<synchronous>, transform_indices = @transform_9, window_bounds = array<i64: 64, 64>}, {transform_indices = @transform_10, window_bounds = array<i64: 1, 8, 128>}, {transform_indices = @transform_11, window_bounds = array<i64: 1, 64, 256>}, {transform_indices = @transform_12, window_bounds = array<i64: 1, 4, 32, 64>}, {transform_indices = @transform_13, window_bounds = array<i64: 1, 64, 256>}, {transform_indices = @transform_14, window_bounds = array<i64: 1, 128, 64>}, {pipeline_mode = #tpu.pipeline_mode<synchronous>, transform_indices = @transform_15, window_bounds = array<i64: 16, 64>}]} {
    %c0_i32 = arith.constant 0 : i32
    %0 = arith.cmpi eq, %arg0, %c0_i32 : i32
    %1 = arith.extui %0 : i1 to i32
    %c0_i32_0 = arith.constant 0 : i32
    %2 = arith.cmpi ne, %1, %c0_i32_0 : i32
    scf.if %2 {
      %c0_65 = arith.constant 0 : index
      %c0_66 = arith.constant 0 : index
      %158 = vector.load %arg1[%c0_65, %c0_66] : memref<16x64xf32, #tpu.memory_space<vmem>>, vector<16x64xf32>
      %c0_67 = arith.constant 0 : index
      %c0_68 = arith.constant 0 : index
      %159 = vector.load %arg17[%c0_67, %c0_68] : memref<16x64xf32, #tpu.memory_space<vmem>>, vector<16x64xf32>
      tpu.vector_store %arg17[%c0_67, %c0_68], %158 {strides = array<i32>} : memref<16x64xf32, #tpu.memory_space<vmem>>, vector<16x64xf32>,
    } else {
    }
    %c0 = arith.constant 0 : index
    %c0_1 = arith.constant 0 : index
    %3 = vector.load %arg17[%c0, %c0_1] : memref<16x64xf32, #tpu.memory_space<vmem>>, vector<16x64xf32>
    %c0_2 = arith.constant 0 : index
    %c0_3 = arith.constant 0 : index
    %c0_4 = arith.constant 0 : index
    %4 = vector.load %arg11[%c0_2, %c0_3, %c0_4] : memref<1x8x128xf32, #tpu.memory_space<vmem>>, vector<1x8x128xf32>
    %5 = vector.shape_cast %4 : vector<1x8x128xf32> to vector<8x128xf32>
    %6 = vector.extract_strided_slice %5 {offsets = [0, 0], sizes = [1, 64], strides = [1, 1]} : vector<8x128xf32> to vector<1x64xf32>
    %7 = vector.extract_strided_slice %5 {offsets = [1, 0], sizes = [1, 64], strides = [1, 1]} : vector<8x128xf32> to vector<1x64xf32>
    %8 = vector.extract_strided_slice %5 {offsets = [2, 0], sizes = [1, 128], strides = [1, 1]} : vector<8x128xf32> to vector<1x128xf32>
    %9 = vector.extract_strided_slice %5 {offsets = [3, 0], sizes = [1, 64], strides = [1, 1]} : vector<8x128xf32> to vector<1x64xf32>
    %10 = arith.mulf %3, %3 : vector<16x64xf32>
    %cst = arith.constant dense<0.000000e+00> : vector<16xf32>
    %11 = vector.multi_reduction <add>, %10, %cst [1] : vector<16x64xf32> to vector<16xf32>
    %12 = vector.shape_cast %11 : vector<16xf32> to vector<16x1xf32>
    %cst_5 = arith.constant 6.400000e+01 : f32
    %13 = vector.broadcast %cst_5 : f32 to vector<16x1xf32>
    %14 = arith.divf %12, %13 : vector<16x1xf32>
    %cst_6 = arith.constant 9.99999997E-7 : f32
    %15 = vector.broadcast %cst_6 : f32 to vector<16x1xf32>
    %16 = arith.addf %14, %15 : vector<16x1xf32>
    %17 = math.rsqrt %16 : vector<16x1xf32>
    %18 = vector.broadcast %17 : vector<16x1xf32> to vector<16x64xf32>
    %19 = arith.mulf %3, %18 : vector<16x64xf32>
    %20 = vector.broadcast %6 : vector<1x64xf32> to vector<16x64xf32>
    %21 = arith.mulf %19, %20 : vector<16x64xf32>
    %22 = arith.truncf %21 : vector<16x64xf32> to vector<16x64xbf16>
    %c0_7 = arith.constant 0 : index
    %c0_8 = arith.constant 0 : index
    %c0_9 = arith.constant 0 : index
    %23 = vector.load %arg12[%c0_7, %c0_8, %c0_9] : memref<1x64x256xbf16, #tpu.memory_space<vmem>>, vector<1x64x256xbf16>
    %24 = vector.shape_cast %23 : vector<1x64x256xbf16> to vector<64x256xbf16>
    %cst_10 = arith.constant dense<0.000000e+00> : vector<16x256xf32>
    %25 = tpu.matmul %22, %24, %cst_10 {dimension_numbers = #tpu.dot_dimension_numbers<[1], [0], [0], [1], [0, 0, 1, 1], [], []>} : vector<16x64xbf16>, vector<64x256xbf16>, vector<16x256xf32> -> vector<16x256xf32>
    %26 = vector.extract_strided_slice %25 {offsets = [0, 0], sizes = [16, 128], strides = [1, 1]} : vector<16x256xf32> to vector<16x128xf32>
    %27 = vector.extract_strided_slice %25 {offsets = [0, 128], sizes = [16, 64], strides = [1, 1]} : vector<16x256xf32> to vector<16x64xf32>
    %28 = vector.extract_strided_slice %25 {offsets = [0, 192], sizes = [16, 64], strides = [1, 1]} : vector<16x256xf32> to vector<16x64xf32>
    %c0_11 = arith.constant 0 : index
    %c0_12 = arith.constant 0 : index
    %29 = vector.load %arg9[%c0_11, %c0_12] : memref<128x128xf32, #tpu.memory_space<vmem>>, vector<128x128xf32>
    %c0_13 = arith.constant 0 : index
    %c0_14 = arith.constant 0 : index
    %30 = vector.load %arg7[%c0_13, %c0_14] : memref<128x128xbf16, #tpu.memory_space<vmem>>, vector<128x128xbf16>
    %c0_15 = arith.constant 0 : index
    %c0_16 = arith.constant 0 : index
    %31 = vector.load %arg3[%c0_15, %c0_16] : memref<16x128xf32, #tpu.memory_space<vmem>>, vector<16x128xf32>
    %c0_17 = arith.constant 0 : index
    %c0_18 = arith.constant 0 : index
    %32 = vector.load %arg4[%c0_17, %c0_18] : memref<16x128xf32, #tpu.memory_space<vmem>>, vector<16x128xf32>
    %33 = arith.mulf %26, %26 : vector<16x128xf32>
    %cst_19 = arith.constant dense<0.000000e+00> : vector<16x128xf32>
    %34 = tpu.matmul %33, %29, %cst_19 {dimension_numbers = #tpu.dot_dimension_numbers<[1], [0], [0], [1], [0, 0, 1, 1], [], []>} : vector<16x128xf32>, vector<128x128xf32>, vector<16x128xf32> -> vector<16x128xf32>
    %cst_20 = arith.constant 3.125000e-02 : f32
    %35 = vector.broadcast %cst_20 : f32 to vector<16x128xf32>
    %36 = arith.mulf %34, %35 : vector<16x128xf32>
    %cst_21 = arith.constant 9.99999997E-7 : f32
    %37 = vector.broadcast %cst_21 : f32 to vector<16x128xf32>
    %38 = arith.addf %36, %37 : vector<16x128xf32>
    %39 = math.rsqrt %38 : vector<16x128xf32>
    %40 = arith.mulf %26, %39 : vector<16x128xf32>
    %41 = vector.broadcast %8 : vector<1x128xf32> to vector<16x128xf32>
    %42 = arith.mulf %40, %41 : vector<16x128xf32>
    %43 = arith.truncf %42 : vector<16x128xf32> to vector<16x128xbf16>
    %cst_22 = arith.constant dense<0.000000e+00> : vector<16x128xf32>
    %44 = tpu.matmul %43, %30, %cst_22 {dimension_numbers = #tpu.dot_dimension_numbers<[1], [0], [0], [1], [0, 0, 1, 1], [], []>} : vector<16x128xbf16>, vector<128x128xbf16>, vector<16x128xf32> -> vector<16x128xf32>
    %45 = arith.mulf %42, %31 : vector<16x128xf32>
    %46 = arith.mulf %44, %32 : vector<16x128xf32>
    %47 = arith.addf %45, %46 : vector<16x128xf32>
    %c0_23 = arith.constant 0 : index
    %c0_24 = arith.constant 0 : index
    %48 = vector.load %arg10[%c0_23, %c0_24] : memref<64x64xf32, #tpu.memory_space<vmem>>, vector<64x64xf32>
    %c0_25 = arith.constant 0 : index
    %c0_26 = arith.constant 0 : index
    %49 = vector.load %arg8[%c0_25, %c0_26] : memref<64x64xbf16, #tpu.memory_space<vmem>>, vector<64x64xbf16>
    %c0_27 = arith.constant 0 : index
    %c0_28 = arith.constant 0 : index
    %50 = vector.load %arg5[%c0_27, %c0_28] : memref<16x64xf32, #tpu.memory_space<vmem>>, vector<16x64xf32>
    %c0_29 = arith.constant 0 : index
    %c0_30 = arith.constant 0 : index
    %51 = vector.load %arg6[%c0_29, %c0_30] : memref<16x64xf32, #tpu.memory_space<vmem>>, vector<16x64xf32>
    %52 = arith.mulf %27, %27 : vector<16x64xf32>
    %cst_31 = arith.constant dense<0.000000e+00> : vector<16x64xf32>
    %53 = tpu.matmul %52, %48, %cst_31 {dimension_numbers = #tpu.dot_dimension_numbers<[1], [0], [0], [1], [0, 0, 1, 1], [], []>} : vector<16x64xf32>, vector<64x64xf32>, vector<16x64xf32> -> vector<16x64xf32>
    %cst_32 = arith.constant 3.125000e-02 : f32
    %54 = vector.broadcast %cst_32 : f32 to vector<16x64xf32>
    %55 = arith.mulf %53, %54 : vector<16x64xf32>
    %cst_33 = arith.constant 9.99999997E-7 : f32
    %56 = vector.broadcast %cst_33 : f32 to vector<16x64xf32>
    %57 = arith.addf %55, %56 : vector<16x64xf32>
    %58 = math.rsqrt %57 : vector<16x64xf32>
    %59 = arith.mulf %27, %58 : vector<16x64xf32>
    %60 = vector.broadcast %9 : vector<1x64xf32> to vector<16x64xf32>
    %61 = arith.mulf %59, %60 : vector<16x64xf32>
    %62 = arith.truncf %61 : vector<16x64xf32> to vector<16x64xbf16>
    %cst_34 = arith.constant dense<0.000000e+00> : vector<16x64xf32>
    %63 = tpu.matmul %62, %49, %cst_34 {dimension_numbers = #tpu.dot_dimension_numbers<[1], [0], [0], [1], [0, 0, 1, 1], [], []>} : vector<16x64xbf16>, vector<64x64xbf16>, vector<16x64xf32> -> vector<16x64xf32>
    %64 = arith.mulf %61, %50 : vector<16x64xf32>
    %65 = arith.mulf %63, %51 : vector<16x64xf32>
    %66 = arith.addf %64, %65 : vector<16x64xf32>
    %cst_35 = arith.constant 0.176776692 : f32
    %67 = vector.broadcast %cst_35 : f32 to vector<16x128xf32>
    %68 = arith.mulf %47, %67 : vector<16x128xf32>
    %69 = vector.extract_strided_slice %68 {offsets = [0, 0], sizes = [16, 32], strides = [1, 1]} : vector<16x128xf32> to vector<16x32xf32>
    %70 = vector.extract_strided_slice %68 {offsets = [0, 32], sizes = [16, 32], strides = [1, 1]} : vector<16x128xf32> to vector<16x32xf32>
    %71 = vector.extract_strided_slice %68 {offsets = [0, 64], sizes = [16, 32], strides = [1, 1]} : vector<16x128xf32> to vector<16x32xf32>
    %72 = vector.extract_strided_slice %68 {offsets = [0, 96], sizes = [16, 32], strides = [1, 1]} : vector<16x128xf32> to vector<16x32xf32>
    %73 = vector.shape_cast %69 : vector<16x32xf32> to vector<1x16x32xf32>
    %74 = vector.shape_cast %70 : vector<16x32xf32> to vector<1x16x32xf32>
    %75 = vector.shape_cast %71 : vector<16x32xf32> to vector<1x16x32xf32>
    %76 = vector.shape_cast %72 : vector<16x32xf32> to vector<1x16x32xf32>
    %77 = tpu.concatenate %73, %74, %75, %76 in 0 : vector<1x16x32xf32>, vector<1x16x32xf32>, vector<1x16x32xf32>, vector<1x16x32xf32> -> vector<4x16x32xf32>
    %78 = arith.truncf %77 : vector<4x16x32xf32> to vector<4x16x32xbf16>
    %79 = vector.extract_strided_slice %66 {offsets = [0, 0], sizes = [16, 32], strides = [1, 1]} : vector<16x64xf32> to vector<16x32xf32>
    %80 = vector.extract_strided_slice %66 {offsets = [0, 0], sizes = [16, 32], strides = [1, 1]} : vector<16x64xf32> to vector<16x32xf32>
    %81 = vector.extract_strided_slice %66 {offsets = [0, 32], sizes = [16, 32], strides = [1, 1]} : vector<16x64xf32> to vector<16x32xf32>
    %82 = vector.extract_strided_slice %66 {offsets = [0, 32], sizes = [16, 32], strides = [1, 1]} : vector<16x64xf32> to vector<16x32xf32>
    %83 = vector.shape_cast %79 : vector<16x32xf32> to vector<1x16x32xf32>
    %84 = vector.shape_cast %80 : vector<16x32xf32> to vector<1x16x32xf32>
    %85 = vector.shape_cast %81 : vector<16x32xf32> to vector<1x16x32xf32>
    %86 = vector.shape_cast %82 : vector<16x32xf32> to vector<1x16x32xf32>
    %87 = tpu.concatenate %83, %84, %85, %86 in 0 : vector<1x16x32xf32>, vector<1x16x32xf32>, vector<1x16x32xf32>, vector<1x16x32xf32> -> vector<4x16x32xf32>
    %88 = arith.truncf %87 : vector<4x16x32xf32> to vector<4x16x32xbf16>
    %89 = vector.extract_strided_slice %28 {offsets = [0, 0], sizes = [16, 32], strides = [1, 1]} : vector<16x64xf32> to vector<16x32xf32>
    %90 = vector.extract_strided_slice %28 {offsets = [0, 0], sizes = [16, 32], strides = [1, 1]} : vector<16x64xf32> to vector<16x32xf32>
    %91 = vector.extract_strided_slice %28 {offsets = [0, 32], sizes = [16, 32], strides = [1, 1]} : vector<16x64xf32> to vector<16x32xf32>
    %92 = vector.extract_strided_slice %28 {offsets = [0, 32], sizes = [16, 32], strides = [1, 1]} : vector<16x64xf32> to vector<16x32xf32>
    %93 = vector.shape_cast %89 : vector<16x32xf32> to vector<1x16x32xf32>
    %94 = vector.shape_cast %90 : vector<16x32xf32> to vector<1x16x32xf32>
    %95 = vector.shape_cast %91 : vector<16x32xf32> to vector<1x16x32xf32>
    %96 = vector.shape_cast %92 : vector<16x32xf32> to vector<1x16x32xf32>
    %97 = tpu.concatenate %93, %94, %95, %96 in 0 : vector<1x16x32xf32>, vector<1x16x32xf32>, vector<1x16x32xf32>, vector<1x16x32xf32> -> vector<4x16x32xf32>
    %98 = arith.truncf %97 : vector<4x16x32xf32> to vector<4x16x32xbf16>
    %cst_36 = arith.constant dense<0.000000e+00> : vector<4x16x16xf32>
    %99 = tpu.matmul %78, %88, %cst_36 {dimension_numbers = #tpu.dot_dimension_numbers<[2], [2], [1], [1], [0, 0, 0, 1, 1, 1], [0], [0]>} : vector<4x16x32xbf16>, vector<4x16x32xbf16>, vector<4x16x16xf32> -> vector<4x16x16xf32>
    %c0_37 = arith.constant 0 : index
    %c0_38 = arith.constant 0 : index
    %100 = vector.load %arg2[%c0_37, %c0_38] : memref<16x16xf32, #tpu.memory_space<vmem>>, vector<16x16xf32>
    %101 = vector.shape_cast %100 : vector<16x16xf32> to vector<1x16x16xf32>
    %102 = vector.broadcast %101 : vector<1x16x16xf32> to vector<4x16x16xf32>
    %103 = arith.addf %99, %102 : vector<4x16x16xf32>
    %cst_39 = arith.constant dense<0xFF800000> : vector<4x16xf32>
    %104 = vector.multi_reduction <maximumf>, %103, %cst_39 [2] : vector<4x16x16xf32> to vector<4x16xf32>
    %105 = vector.shape_cast %104 : vector<4x16xf32> to vector<4x16x1xf32>
    %106 = vector.broadcast %105 : vector<4x16x1xf32> to vector<4x16x16xf32>
    %107 = arith.subf %103, %106 : vector<4x16x16xf32>
    %108 = math.exp %107 : vector<4x16x16xf32>
    %cst_40 = arith.constant dense<0.000000e+00> : vector<4x16xf32>
    %109 = vector.multi_reduction <add>, %108, %cst_40 [2] : vector<4x16x16xf32> to vector<4x16xf32>
    %110 = vector.shape_cast %109 : vector<4x16xf32> to vector<4x16x1xf32>
    %111 = tpu.reciprocal %110 {approx = true} : vector<4x16x1xf32> -> vector<4x16x1xf32>
    %112 = vector.broadcast %111 : vector<4x16x1xf32> to vector<4x16x16xf32>
    %113 = arith.mulf %108, %112 : vector<4x16x16xf32>
    %114 = arith.truncf %113 : vector<4x16x16xf32> to vector<4x16x16xbf16>
    %cst_41 = arith.constant dense<0.000000e+00> : vector<4x16x32xf32>
    %115 = tpu.matmul %114, %98, %cst_41 {dimension_numbers = #tpu.dot_dimension_numbers<[2], [1], [1], [2], [0, 0, 0, 1, 1, 2], [0], [0]>} : vector<4x16x16xbf16>, vector<4x16x32xbf16>, vector<4x16x32xf32> -> vector<4x16x32xf32>
    %116 = arith.truncf %115 : vector<4x16x32xf32> to vector<4x16x32xbf16>
    %c0_42 = arith.constant 0 : index
    %c0_43 = arith.constant 0 : index
    %c0_44 = arith.constant 0 : index
    %c0_45 = arith.constant 0 : index
    %117 = vector.load %arg13[%c0_42, %c0_43, %c0_44, %c0_45] : memref<1x4x32x64xbf16, #tpu.memory_space<vmem>>, vector<1x4x32x64xbf16>
    %118 = vector.shape_cast %117 : vector<1x4x32x64xbf16> to vector<4x32x64xbf16>
    %cst_46 = arith.constant dense<0.000000e+00> : vector<4x16x64xf32>
    %119 = tpu.matmul %116, %118, %cst_46 {dimension_numbers = #tpu.dot_dimension_numbers<[2], [1], [1], [2], [0, 0, 0, 1, 1, 2], [0], [0]>} : vector<4x16x32xbf16>, vector<4x32x64xbf16>, vector<4x16x64xf32> -> vector<4x16x64xf32>
    %cst_47 = arith.constant dense<0.000000e+00> : vector<16x64xf32>
    %120 = vector.multi_reduction <add>, %119, %cst_47 [0] : vector<4x16x64xf32> to vector<16x64xf32>
    %121 = arith.addf %3, %120 : vector<16x64xf32>
    %122 = arith.mulf %121, %121 : vector<16x64xf32>
    %cst_48 = arith.constant dense<0.000000e+00> : vector<16xf32>
    %123 = vector.multi_reduction <add>, %122, %cst_48 [1] : vector<16x64xf32> to vector<16xf32>
    %124 = vector.shape_cast %123 : vector<16xf32> to vector<16x1xf32>
    %cst_49 = arith.constant 6.400000e+01 : f32
    %125 = vector.broadcast %cst_49 : f32 to vector<16x1xf32>
    %126 = arith.divf %124, %125 : vector<16x1xf32>
    %cst_50 = arith.constant 9.99999997E-7 : f32
    %127 = vector.broadcast %cst_50 : f32 to vector<16x1xf32>
    %128 = arith.addf %126, %127 : vector<16x1xf32>
    %129 = math.rsqrt %128 : vector<16x1xf32>
    %130 = vector.broadcast %129 : vector<16x1xf32> to vector<16x64xf32>
    %131 = arith.mulf %121, %130 : vector<16x64xf32>
    %132 = vector.broadcast %7 : vector<1x64xf32> to vector<16x64xf32>
    %133 = arith.mulf %131, %132 : vector<16x64xf32>
    %134 = arith.truncf %133 : vector<16x64xf32> to vector<16x64xbf16>
    %c0_51 = arith.constant 0 : index
    %c0_52 = arith.constant 0 : index
    %c0_53 = arith.constant 0 : index
    %135 = vector.load %arg14[%c0_51, %c0_52, %c0_53] : memref<1x64x256xbf16, #tpu.memory_space<vmem>>, vector<1x64x256xbf16>
    %136 = vector.shape_cast %135 : vector<1x64x256xbf16> to vector<64x256xbf16>
    %cst_54 = arith.constant dense<0.000000e+00> : vector<16x256xf32>
    %137 = tpu.matmul %134, %136, %cst_54 {dimension_numbers = #tpu.dot_dimension_numbers<[1], [0], [0], [1], [0, 0, 1, 1], [], []>} : vector<16x64xbf16>, vector<64x256xbf16>, vector<16x256xf32> -> vector<16x256xf32>
    %138 = vector.extract_strided_slice %137 {offsets = [0, 0], sizes = [16, 128], strides = [1, 1]} : vector<16x256xf32> to vector<16x128xf32>
    %139 = vector.extract_strided_slice %137 {offsets = [0, 128], sizes = [16, 128], strides = [1, 1]} : vector<16x256xf32> to vector<16x128xf32>
    %cst_55 = arith.constant 0.000000e+00 : f32
    %140 = vector.broadcast %cst_55 : f32 to vector<16x128xf32>
    %141 = arith.subf %140, %138 : vector<16x128xf32>
    %142 = math.exp %141 : vector<16x128xf32>
    %cst_56 = arith.constant 1.000000e+00 : f32
    %143 = vector.broadcast %cst_56 : f32 to vector<16x128xf32>
    %144 = arith.addf %143, %142 : vector<16x128xf32>
    %cst_57 = arith.constant 1.000000e+00 : f32
    %145 = vector.broadcast %cst_57 : f32 to vector<16x128xf32>
    %146 = arith.divf %145, %144 : vector<16x128xf32>
    %147 = arith.mulf %138, %146 : vector<16x128xf32>
    %148 = arith.mulf %147, %139 : vector<16x128xf32>
    %149 = arith.truncf %148 : vector<16x128xf32> to vector<16x128xbf16>
    %c0_58 = arith.constant 0 : index
    %c0_59 = arith.constant 0 : index
    %c0_60 = arith.constant 0 : index
    %150 = vector.load %arg15[%c0_58, %c0_59, %c0_60] : memref<1x128x64xbf16, #tpu.memory_space<vmem>>, vector<1x128x64xbf16>
    %151 = vector.shape_cast %150 : vector<1x128x64xbf16> to vector<128x64xbf16>
    %cst_61 = arith.constant dense<0.000000e+00> : vector<16x64xf32>
    %152 = tpu.matmul %149, %151, %cst_61 {dimension_numbers = #tpu.dot_dimension_numbers<[1], [0], [0], [1], [0, 0, 1, 1], [], []>} : vector<16x128xbf16>, vector<128x64xbf16>, vector<16x64xf32> -> vector<16x64xf32>
    %153 = arith.addf %121, %152 : vector<16x64xf32>
    %c0_62 = arith.constant 0 : index
    %c0_63 = arith.constant 0 : index
    %154 = vector.load %arg17[%c0_62, %c0_63] : memref<16x64xf32, #tpu.memory_space<vmem>>, vector<16x64xf32>
    tpu.vector_store %arg17[%c0_62, %c0_63], %153 {strides = array<i32>} : memref<16x64xf32, #tpu.memory_space<vmem>>, vector<16x64xf32>,
    %c1_i32 = arith.constant 1 : i32
    %155 = arith.cmpi eq, %arg0, %c1_i32 : i32
    %156 = arith.extui %155 : i1 to i32
    %c0_i32_64 = arith.constant 0 : i32
    %157 = arith.cmpi ne, %156, %c0_i32_64 : i32
    scf.if %157 {
      %c0_65 = arith.constant 0 : index
      %c0_66 = arith.constant 0 : index
      %158 = vector.load %arg16[%c0_65, %c0_66] : memref<16x64xf32, #tpu.memory_space<vmem>>, vector<16x64xf32>
      tpu.vector_store %arg16[%c0_65, %c0_66], %153 {strides = array<i32>} : memref<16x64xf32, #tpu.memory_space<vmem>>, vector<16x64xf32>,
    } else {
    }
    return
  }
  func.func @transform_0(%arg0: i32) -> (i32, i32) {
    %c0_i32 = arith.constant 0 : i32
    %c0_i32_0 = arith.constant 0 : i32
    %c0_i32_1 = arith.constant 0 : i32
    return %c0_i32, %c0_i32_0 : i32, i32
  }
  func.func @transform_1(%arg0: i32) -> (i32, i32) {
    %c0_i32 = arith.constant 0 : i32
    %c0_i32_0 = arith.constant 0 : i32
    %c0_i32_1 = arith.constant 0 : i32
    return %c0_i32, %c0_i32_0 : i32, i32
  }
  func.func @transform_2(%arg0: i32) -> (i32, i32) {
    %c0_i32 = arith.constant 0 : i32
    %c0_i32_0 = arith.constant 0 : i32
    %c0_i32_1 = arith.constant 0 : i32
    return %c0_i32, %c0_i32_0 : i32, i32
  }
  func.func @transform_3(%arg0: i32) -> (i32, i32) {
    %c0_i32 = arith.constant 0 : i32
    %c0_i32_0 = arith.constant 0 : i32
    %c0_i32_1 = arith.constant 0 : i32
    return %c0_i32, %c0_i32_0 : i32, i32
  }
  func.func @transform_4(%arg0: i32) -> (i32, i32) {
    %c0_i32 = arith.constant 0 : i32
    %c0_i32_0 = arith.constant 0 : i32
    %c0_i32_1 = arith.constant 0 : i32
    return %c0_i32, %c0_i32_0 : i32, i32
  }
  func.func @transform_5(%arg0: i32) -> (i32, i32) {
    %c0_i32 = arith.constant 0 : i32
    %c0_i32_0 = arith.constant 0 : i32
    %c0_i32_1 = arith.constant 0 : i32
    return %c0_i32, %c0_i32_0 : i32, i32
  }
  func.func @transform_6(%arg0: i32) -> (i32, i32) {
    %c0_i32 = arith.constant 0 : i32
    %c0_i32_0 = arith.constant 0 : i32
    %c0_i32_1 = arith.constant 0 : i32
    return %c0_i32, %c0_i32_0 : i32, i32
  }
  func.func @transform_7(%arg0: i32) -> (i32, i32) {
    %c0_i32 = arith.constant 0 : i32
    %c0_i32_0 = arith.constant 0 : i32
    %c0_i32_1 = arith.constant 0 : i32
    return %c0_i32, %c0_i32_0 : i32, i32
  }
  func.func @transform_8(%arg0: i32) -> (i32, i32) {
    %c0_i32 = arith.constant 0 : i32
    %c0_i32_0 = arith.constant 0 : i32
    %c0_i32_1 = arith.constant 0 : i32
    return %c0_i32, %c0_i32_0 : i32, i32
  }
  func.func @transform_9(%arg0: i32) -> (i32, i32) {
    %c0_i32 = arith.constant 0 : i32
    %c0_i32_0 = arith.constant 0 : i32
    %c0_i32_1 = arith.constant 0 : i32
    return %c0_i32, %c0_i32_0 : i32, i32
  }
  func.func @transform_10(%arg0: i32) -> (i32, i32, i32) {
    %c0_i32 = arith.constant 0 : i32
    %c0_i32_0 = arith.constant 0 : i32
    %c0_i32_1 = arith.constant 0 : i32
    return %arg0, %c0_i32, %c0_i32_0 : i32, i32, i32
  }
  func.func @transform_11(%arg0: i32) -> (i32, i32, i32) {
    %c0_i32 = arith.constant 0 : i32
    %c0_i32_0 = arith.constant 0 : i32
    %c0_i32_1 = arith.constant 0 : i32
    return %arg0, %c0_i32, %c0_i32_0 : i32, i32, i32
  }
  func.func @transform_12(%arg0: i32) -> (i32, i32, i32, i32) {
    %c0_i32 = arith.constant 0 : i32
    %c0_i32_0 = arith.constant 0 : i32
    %c0_i32_1 = arith.constant 0 : i32
    %c0_i32_2 = arith.constant 0 : i32
    return %arg0, %c0_i32, %c0_i32_0, %c0_i32_1 : i32, i32, i32, i32
  }
  func.func @transform_13(%arg0: i32) -> (i32, i32, i32) {
    %c0_i32 = arith.constant 0 : i32
    %c0_i32_0 = arith.constant 0 : i32
    %c0_i32_1 = arith.constant 0 : i32
    return %arg0, %c0_i32, %c0_i32_0 : i32, i32, i32
  }
  func.func @transform_14(%arg0: i32) -> (i32, i32, i32) {
    %c0_i32 = arith.constant 0 : i32
    %c0_i32_0 = arith.constant 0 : i32
    %c0_i32_1 = arith.constant 0 : i32
    return %arg0, %c0_i32, %c0_i32_0 : i32, i32, i32
  }
  func.func @transform_15(%arg0: i32) -> (i32, i32) {
    %c0_i32 = arith.constant 0 : i32
    %c0_i32_0 = arith.constant 0 : i32
    %c0_i32_1 = arith.constant 0 : i32
    return %c0_i32, %c0_i32_0 : i32, i32
  }
}

</mosaic_0001>

<llo_original>
// kernel: tile.23
$region0: #{tile.23}
  #allocation0 [shape = 's32[1]{0}', space=sflag, size = 0x4, scoped, tag = 'scoped memory for tile.23']
  %s0 = inlined_call_operand.vmem [shape: f32[8,32], index: 0, kind: input, shape index: {}]
  %s1 = inlined_call_operand.vmem [shape: f32[2,8,4,32], index: 1, kind: output, shape index: {}]
  // Predicated region
  $region2: #{tile.23} parent=0 // pred_check
    _
  $region3: #{tile.23} parent=0 // pred_check_branch
    %3 = sbr.rel (0) target = $region5
  $region4: #{tile.23} parent=0 // pred_region
    _
  $region5: #{tile.23} parent=0 // pred_fallthru
    _
  %v4 = vld [vmem:[%s0] ss:$0 sm:$0xff]
  %5 = vst [vmem:[%s1] sm:$0xf] %v4
  %s6 = scalar_lea.vmem %s1, 32
  %7 = vst [vmem:[%s6] sm:$0xf] %v4
  %s8 = scalar_lea.vmem %s0, 1
  %v9 = vld [vmem:[%s8] ss:$0 sm:$0xff]
  %s10 = scalar_lea.vmem %s1, 4
  %11 = vst [vmem:[%s10] sm:$0xf] %v9
  %s12 = scalar_lea.vmem %s1, 36
  %13 = vst [vmem:[%s12] sm:$0xf] %v9
  %s14 = scalar_lea.vmem %s0, 2
  %v15 = vld [vmem:[%s14] ss:$0 sm:$0xff]
  %s16 = scalar_lea.vmem %s1, 8
  %17 = vst [vmem:[%s16] sm:$0xf] %v15
  %s18 = scalar_lea.vmem %s1, 40
  %19 = vst [vmem:[%s18] sm:$0xf] %v15
  %s20 = scalar_lea.vmem %s0, 3
  %v21 = vld [vmem:[%s20] ss:$0 sm:$0xff]
  %s22 = scalar_lea.vmem %s1, 12
  %23 = vst [vmem:[%s22] sm:$0xf] %v21
  %s24 = scalar_lea.vmem %s1, 44
  %25 = vst [vmem:[%s24] sm:$0xf] %v21
  %s26 = scalar_lea.vmem %s0, 4
  %v27 = vld [vmem:[%s26] ss:$0 sm:$0xff]
  %s28 = scalar_lea.vmem %s1, 16
  %29 = vst [vmem:[%s28] sm:$0xf] %v27
  %s30 = scalar_lea.vmem %s1, 48
  %31 = vst [vmem:[%s30] sm:$0xf] %v27
  %s32 = scalar_lea.vmem %s0, 5
  %v33 = vld [vmem:[%s32] ss:$0 sm:$0xff]
  %s34 = scalar_lea.vmem %s1, 20
  %35 = vst [vmem:[%s34] sm:$0xf] %v33
  %s36 = scalar_lea.vmem %s1, 52
  %37 = vst [vmem:[%s36] sm:$0xf] %v33
  %s38 = scalar_lea.vmem %s0, 6
  %v39 = vld [vmem:[%s38] ss:$0 sm:$0xff]
  %s40 = scalar_lea.vmem %s1, 24
  %41 = vst [vmem:[%s40] sm:$0xf] %v39
  %s42 = scalar_lea.vmem %s1, 56
  %43 = vst [vmem:[%s42] sm:$0xf] %v39
  %s44 = scalar_lea.vmem %s0, 7
  %v45 = vld [vmem:[%s44] ss:$0 sm:$0xff]
  %s46 = scalar_lea.vmem %s1, 28
  %47 = vst [vmem:[%s46] sm:$0xf] %v45
  %s48 = scalar_lea.vmem %s1, 60
  %49 = vst [vmem:[%s48] sm:$0xf] %v45

// kernel: tile.24
$region0: #{tile.24}
  %s0 = inlined_call_operand.vmem [shape: f32[2,8,4,32], index: 0, kind: input, shape index: {}]
  %s1 = inlined_call_operand.vmem [shape: f32[16,128], index: 1, kind: output, shape index: {}]
  $region1: #{tile.24} parent=0
    #allocation0 [shape = 'u8[65536]{0}', space=vmem, size = 0x10000, scoped, tag = 'scoped mem for input reshape']
    %s3 = ssub.s32 16, 1
    %s4 = scalar_lea.vmem %s0, 60
    %v5 = vld [vmem:[%s4] sm:%s3]
    %s6 = scalar_lea.vmem [#allocation0], 120
    %7 = vst [vmem:[%s6] sm:%s3] %v5
    %s8 = scalar_lea.vmem %s0, 56
    %v9 = vld [vmem:[%s8] sm:%s3]
    %s10 = scalar_lea.vmem [#allocation0], 112
    %11 = vst [vmem:[%s10] sm:%s3] %v9
    %s12 = scalar_lea.vmem %s0, 52
    %v13 = vld [vmem:[%s12] sm:%s3]
    %s14 = scalar_lea.vmem [#allocation0], 104
    %15 = vst [vmem:[%s14] sm:%s3] %v13
    %s16 = scalar_lea.vmem %s0, 48
    %v17 = vld [vmem:[%s16] sm:%s3]
    %s18 = scalar_lea.vmem [#allocation0], 96
    %19 = vst [vmem:[%s18] sm:%s3] %v17
    %s20 = scalar_lea.vmem %s0, 44
    %v21 = vld [vmem:[%s20] sm:%s3]
    %s22 = scalar_lea.vmem [#allocation0], 88
    %23 = vst [vmem:[%s22] sm:%s3] %v21
    %s24 = scalar_lea.vmem %s0, 40
    %v25 = vld [vmem:[%s24] sm:%s3]
    %s26 = scalar_lea.vmem [#allocation0], 80
    %27 = vst [vmem:[%s26] sm:%s3] %v25
    %s28 = scalar_lea.vmem %s0, 36
    %v29 = vld [vmem:[%s28] sm:%s3]
    %s30 = scalar_lea.vmem [#allocation0], 72
    %31 = vst [vmem:[%s30] sm:%s3] %v29
    %s32 = scalar_lea.vmem %s0, 32
    %v33 = vld [vmem:[%s32] sm:%s3]
    %s34 = scalar_lea.vmem [#allocation0], 64
    %35 = vst [vmem:[%s34] sm:%s3] %v33
    %s36 = scalar_lea.vmem %s0, 28
    %v37 = vld [vmem:[%s36] sm:%s3]
    %s38 = scalar_lea.vmem [#allocation0], 56
    %39 = vst [vmem:[%s38] sm:%s3] %v37
    %s40 = scalar_lea.vmem %s0, 24
    %v41 = vld [vmem:[%s40] sm:%s3]
    %s42 = scalar_lea.vmem [#allocation0], 48
    %43 = vst [vmem:[%s42] sm:%s3] %v41
    %s44 = scalar_lea.vmem %s0, 20
    %v45 = vld [vmem:[%s44] sm:%s3]
    %s46 = scalar_lea.vmem [#allocation0], 40
    %47 = vst [vmem:[%s46] sm:%s3] %v45
    %s48 = scalar_lea.vmem %s0, 16
    %v49 = vld [vmem:[%s48] sm:%s3]
    %s50 = scalar_lea.vmem [#allocation0], 32
    %51 = vst [vmem:[%s50] sm:%s3] %v49
    %s52 = scalar_lea.vmem %s0, 12
    %v53 = vld [vmem:[%s52] sm:%s3]
    %s54 = scalar_lea.vmem [#allocation0], 24
    %55 = vst [vmem:[%s54] sm:%s3] %v53
    %s56 = scalar_lea.vmem %s0, 8
    %v57 = vld [vmem:[%s56] sm:%s3]
    %s58 = scalar_lea.vmem [#allocation0], 16
    %59 = vst [vmem:[%s58] sm:%s3] %v57
    %s60 = scalar_lea.vmem %s0, 4
    %v61 = vld [vmem:[%s60] sm:%s3]
    %s62 = scalar_lea.vmem [#allocation0], 8
    %63 = vst [vmem:[%s62] sm:%s3] %v61
    %v64 = vld [vmem:[%s0] sm:%s3]
    %65 = vst [vmem:[#allocation0] sm:%s3] %v64
    %v66 = vld [vmem:[#allocation0] ss:$8 sm:$0xf]
    %v67 = vld [vmem:[#allocation0] ss:$8 sm:$0xf0]
    %vm68 = vcmask 1047556
    %v69 = vsel %vm68, %v67, %v66
    %vm70 = vcmask 261120
    %71 = vst.msk [vmem:[%s1] sm:$0xff] %vm70, %v69
    %s72 = scalar_lea.vmem [#allocation0], 64
    %v73 = vld [vmem:[%s72] ss:$8 sm:$0xf]
    %s74 = scalar_lea.vmem [#allocation0], 64
    %v75 = vld [vmem:[%s74] ss:$8 sm:$0xf0]
    %vm76 = vcmask 1047556
    %v77 = vsel %vm76, %v75, %v73
    %vm78 = vcmask 261120
    %s79 = scalar_lea.vmem %s1, 8
    %80 = vst.msk [vmem:[%s79] sm:$0xff] %vm78, %v77
    %s81 = scalar_lea.vmem [#allocation0], 3
    %v82 = vld [vmem:[%s81] ss:$8 sm:$0xf]
    %s83 = scalar_lea.vmem [#allocation0], 3
    %v84 = vld [vmem:[%s83] ss:$8 sm:$0xf0]
    %vm85 = vcmask 1047556
    %v86 = vsel %vm85, %v84, %v82
    %87 = vrot.lane.b32.xlu0 %v86, 96
    %v88 = vpop.permute.xlu0 %87
    %vm89 = vcmask 1048320
    %90 = vst.msk [vmem:[%s1] sm:$0xff] %vm89, %v88
    %s91 = scalar_lea.vmem [#allocation0], 67
    %v92 = vld [vmem:[%s91] ss:$8 sm:$0xf]
    %s93 = scalar_lea.vmem [#allocation0], 67
    %v94 = vld [vmem:[%s93] ss:$8 sm:$0xf0]
    %vm95 = vcmask 1047556
    %v96 = vsel %vm95, %v94, %v92
    %97 = vrot.lane.b32.xlu0 %v96, 96
    %v98 = vpop.permute.xlu0 %97
    %vm99 = vcmask 1048320
    %s100 = scalar_lea.vmem %s1, 8
    %101 = vst.msk [vmem:[%s100] sm:$0xff] %vm99, %v98
    %s102 = scalar_lea.vmem [#allocation0], 2
    %v103 = vld [vmem:[%s102] ss:$8 sm:$0xf]
    %s104 = scalar_lea.vmem [#allocation0], 2
    %v105 = vld [vmem:[%s104] ss:$8 sm:$0xf0]
    %vm106 = vcmask 1047556
    %v107 = vsel %vm106, %v105, %v103
    %108 = vrot.lane.b32.xlu0 %v107, 64
    %v109 = vpop.permute.xlu0 %108
    %vm110 = vcmask 785920
    %111 = vst.msk [vmem:[%s1] sm:$0xff] %vm110, %v109
    %s112 = scalar_lea.vmem [#allocation0], 66
    %v113 = vld [vmem:[%s112] ss:$8 sm:$0xf]
    %s114 = scalar_lea.vmem [#allocation0], 66
    %v115 = vld [vmem:[%s114] ss:$8 sm:$0xf0]
    %vm116 = vcmask 1047556
    %v117 = vsel %vm116, %v115, %v113
    %118 = vrot.lane.b32.xlu0 %v117, 64
    %v119 = vpop.permute.xlu0 %118
    %vm120 = vcmask 785920
    %s121 = scalar_lea.vmem %s1, 8
    %122 = vst.msk [vmem:[%s121] sm:$0xff] %vm120, %v119
    %s123 = scalar_lea.vmem [#allocation0], 1
    %v124 = vld [vmem:[%s123] ss:$8 sm:$0xf]
    %s125 = scalar_lea.vmem [#allocation0], 1
    %v126 = vld [vmem:[%s125] ss:$8 sm:$0xf0]
    %vm127 = vcmask 1047556
    %v128 = vsel %vm127, %v126, %v124
    %129 = vrot.lane.b32.xlu0 %v128, 32
    %v130 = vpop.permute.xlu0 %129
    %vm131 = vcmask 523520
    %132 = vst.msk [vmem:[%s1] sm:$0xff] %vm131, %v130
    %s133 = scalar_lea.vmem [#allocation0], 65
    %v134 = vld [vmem:[%s133] ss:$8 sm:$0xf]
    %s135 = scalar_lea.vmem [#allocation0], 65
    %v136 = vld [vmem:[%s135] ss:$8 sm:$0xf0]
    %vm137 = vcmask 1047556
    %v138 = vsel %vm137, %v136, %v134
    %139 = vrot.lane.b32.xlu0 %v138, 32
    %v140 = vpop.permute.xlu0 %139
    %vm141 = vcmask 523520
    %s142 = scalar_lea.vmem %s1, 8
    %143 = vst.msk [vmem:[%s142] sm:$0xff] %vm141, %v140

// kernel: tile.33
$region0: #{tile.33}
  #allocation0 [shape = 's32[1]{0}', space=sflag, size = 0x4, scoped, tag = 'scoped memory for tile.33']
  %s0 = inlined_call_operand.vmem [shape: f32[8,32], index: 0, kind: input, shape index: {}]
  %s1 = inlined_call_operand.vmem [shape: f32[2,8,2,32], index: 1, kind: output, shape index: {}]
  // Predicated region
  $region2: #{tile.33} parent=0 // pred_check
    _
  $region3: #{tile.33} parent=0 // pred_check_branch
    %3 = sbr.rel (0) target = $region5
  $region4: #{tile.33} parent=0 // pred_region
    _
  $region5: #{tile.33} parent=0 // pred_fallthru
    _
  %v4 = vld [vmem:[%s0] ss:$0 sm:$0xff]
  %5 = vst [vmem:[%s1] sm:$0x3] %v4
  %s6 = scalar_lea.vmem %s1, 16
  %7 = vst [vmem:[%s6] sm:$0x3] %v4
  %s8 = scalar_lea.vmem %s0, 1
  %v9 = vld [vmem:[%s8] ss:$0 sm:$0xff]
  %s10 = scalar_lea.vmem %s1, 2
  %11 = vst [vmem:[%s10] sm:$0x3] %v9
  %s12 = scalar_lea.vmem %s1, 18
  %13 = vst [vmem:[%s12] sm:$0x3] %v9
  %s14 = scalar_lea.vmem %s0, 2
  %v15 = vld [vmem:[%s14] ss:$0 sm:$0xff]
  %s16 = scalar_lea.vmem %s1, 4
  %17 = vst [vmem:[%s16] sm:$0x3] %v15
  %s18 = scalar_lea.vmem %s1, 20
  %19 = vst [vmem:[%s18] sm:$0x3] %v15
  %s20 = scalar_lea.vmem %s0, 3
  %v21 = vld [vmem:[%s20] ss:$0 sm:$0xff]
  %s22 = scalar_lea.vmem %s1, 6
  %23 = vst [vmem:[%s22] sm:$0x3] %v21
  %s24 = scalar_lea.vmem %s1, 22
  %25 = vst [vmem:[%s24] sm:$0x3] %v21
  %s26 = scalar_lea.vmem %s0, 4
  %v27 = vld [vmem:[%s26] ss:$0 sm:$0xff]
  %s28 = scalar_lea.vmem %s1, 8
  %29 = vst [vmem:[%s28] sm:$0x3] %v27
  %s30 = scalar_lea.vmem %s1, 24
  %31 = vst [vmem:[%s30] sm:$0x3] %v27
  %s32 = scalar_lea.vmem %s0, 5
  %v33 = vld [vmem:[%s32] ss:$0 sm:$0xff]
  %s34 = scalar_lea.vmem %s1, 10
  %35 = vst [vmem:[%s34] sm:$0x3] %v33
  %s36 = scalar_lea.vmem %s1, 26
  %37 = vst [vmem:[%s36] sm:$0x3] %v33
  %s38 = scalar_lea.vmem %s0, 6
  %v39 = vld [vmem:[%s38] ss:$0 sm:$0xff]
  %s40 = scalar_lea.vmem %s1, 12
  %41 = vst [vmem:[%s40] sm:$0x3] %v39
  %s42 = scalar_lea.vmem %s1, 28
  %43 = vst [vmem:[%s42] sm:$0x3] %v39
  %s44 = scalar_lea.vmem %s0, 7
  %v45 = vld [vmem:[%s44] ss:$0 sm:$0xff]
  %s46 = scalar_lea.vmem %s1, 14
  %47 = vst [vmem:[%s46] sm:$0x3] %v45
  %s48 = scalar_lea.vmem %s1, 30
  %49 = vst [vmem:[%s48] sm:$0x3] %v45

// kernel: tile.34
$region0: #{tile.34}
  %s0 = inlined_call_operand.vmem [shape: f32[2,8,2,32], index: 0, kind: input, shape index: {}]
  %s1 = inlined_call_operand.vmem [shape: f32[16,64], index: 1, kind: output, shape index: {}]
  $region1: #{tile.34} parent=0
    #allocation0 [shape = 'u8[65536]{0}', space=vmem, size = 0x10000, scoped, tag = 'scoped mem for input reshape']
    %s3 = ssub.s32 4, 1
    %s4 = scalar_lea.vmem %s0, 30
    %v5 = vld [vmem:[%s4] sm:%s3]
    %s6 = scalar_lea.vmem [#allocation0], 120
    %7 = vst [vmem:[%s6] sm:%s3] %v5
    %s8 = scalar_lea.vmem %s0, 28
    %v9 = vld [vmem:[%s8] sm:%s3]
    %s10 = scalar_lea.vmem [#allocation0], 112
    %11 = vst [vmem:[%s10] sm:%s3] %v9
    %s12 = scalar_lea.vmem %s0, 26
    %v13 = vld [vmem:[%s12] sm:%s3]
    %s14 = scalar_lea.vmem [#allocation0], 104
    %15 = vst [vmem:[%s14] sm:%s3] %v13
    %s16 = scalar_lea.vmem %s0, 24
    %v17 = vld [vmem:[%s16] sm:%s3]
    %s18 = scalar_lea.vmem [#allocation0], 96
    %19 = vst [vmem:[%s18] sm:%s3] %v17
    %s20 = scalar_lea.vmem %s0, 22
    %v21 = vld [vmem:[%s20] sm:%s3]
    %s22 = scalar_lea.vmem [#allocation0], 88
    %23 = vst [vmem:[%s22] sm:%s3] %v21
    %s24 = scalar_lea.vmem %s0, 20
    %v25 = vld [vmem:[%s24] sm:%s3]
    %s26 = scalar_lea.vmem [#allocation0], 80
    %27 = vst [vmem:[%s26] sm:%s3] %v25
    %s28 = scalar_lea.vmem %s0, 18
    %v29 = vld [vmem:[%s28] sm:%s3]
    %s30 = scalar_lea.vmem [#allocation0], 72
    %31 = vst [vmem:[%s30] sm:%s3] %v29
    %s32 = scalar_lea.vmem %s0, 16
    %v33 = vld [vmem:[%s32] sm:%s3]
    %s34 = scalar_lea.vmem [#allocation0], 64
    %35 = vst [vmem:[%s34] sm:%s3] %v33
    %s36 = scalar_lea.vmem %s0, 14
    %v37 = vld [vmem:[%s36] sm:%s3]
    %s38 = scalar_lea.vmem [#allocation0], 56
    %39 = vst [vmem:[%s38] sm:%s3] %v37
    %s40 = scalar_lea.vmem %s0, 12
    %v41 = vld [vmem:[%s40] sm:%s3]
    %s42 = scalar_lea.vmem [#allocation0], 48
    %43 = vst [vmem:[%s42] sm:%s3] %v41
    %s44 = scalar_lea.vmem %s0, 10
    %v45 = vld [vmem:[%s44] sm:%s3]
    %s46 = scalar_lea.vmem [#allocation0], 40
    %47 = vst [vmem:[%s46] sm:%s3] %v45
    %s48 = scalar_lea.vmem %s0, 8
    %v49 = vld [vmem:[%s48] sm:%s3]
    %s50 = scalar_lea.vmem [#allocation0], 32
    %51 = vst [vmem:[%s50] sm:%s3] %v49
    %s52 = scalar_lea.vmem %s0, 6
    %v53 = vld [vmem:[%s52] sm:%s3]
    %s54 = scalar_lea.vmem [#allocation0], 24
    %55 = vst [vmem:[%s54] sm:%s3] %v53
    %s56 = scalar_lea.vmem %s0, 4
    %v57 = vld [vmem:[%s56] sm:%s3]
    %s58 = scalar_lea.vmem [#allocation0], 16
    %59 = vst [vmem:[%s58] sm:%s3] %v57
    %s60 = scalar_lea.vmem %s0, 2
    %v61 = vld [vmem:[%s60] sm:%s3]
    %s62 = scalar_lea.vmem [#allocation0], 8
    %63 = vst [vmem:[%s62] sm:%s3] %v61
    %v64 = vld [vmem:[%s0] sm:%s3]
    %65 = vst [vmem:[#allocation0] sm:%s3] %v64
    %v66 = vld [vmem:[#allocation0] ss:$8 sm:$0xf]
    %v67 = vld [vmem:[#allocation0] ss:$8 sm:$0xf0]
    %vm68 = vcmask 1047556
    %v69 = vsel %vm68, %v67, %v66
    %vm70 = vcmask 261120
    %71 = vst.msk [vmem:[%s1] sm:$0xff] %vm70, %v69
    %s72 = scalar_lea.vmem [#allocation0], 64
    %v73 = vld [vmem:[%s72] ss:$8 sm:$0xf]
    %s74 = scalar_lea.vmem [#allocation0], 64
    %v75 = vld [vmem:[%s74] ss:$8 sm:$0xf0]
    %vm76 = vcmask 1047556
    %v77 = vsel %vm76, %v75, %v73
    %vm78 = vcmask 261120
    %s79 = scalar_lea.vmem %s1, 8
    %80 = vst.msk [vmem:[%s79] sm:$0xff] %vm78, %v77
    %s81 = scalar_lea.vmem [#allocation0], 1
    %v82 = vld [vmem:[%s81] ss:$8 sm:$0xf]
    %s83 = scalar_lea.vmem [#allocation0], 1
    %v84 = vld [vmem:[%s83] ss:$8 sm:$0xf0]
    %vm85 = vcmask 1047556
    %v86 = vsel %vm85, %v84, %v82
    %87 = vrot.lane.b32.xlu0 %v86, 32
    %v88 = vpop.permute.xlu0 %87
    %vm89 = vcmask 523520
    %90 = vst.msk [vmem:[%s1] sm:$0xff] %vm89, %v88
    %s91 = scalar_lea.vmem [#allocation0], 65
    %v92 = vld [vmem:[%s91] ss:$8 sm:$0xf]
    %s93 = scalar_lea.vmem [#allocation0], 65
    %v94 = vld [vmem:[%s93] ss:$8 sm:$0xf0]
    %vm95 = vcmask 1047556
    %v96 = vsel %vm95, %v94, %v92
    %97 = vrot.lane.b32.xlu0 %v96, 32
    %v98 = vpop.permute.xlu0 %97
    %vm99 = vcmask 523520
    %s100 = scalar_lea.vmem %s1, 8
    %101 = vst.msk [vmem:[%s100] sm:$0xff] %vm99, %v98

// kernel: qwen3_forward.3
$region0: #{qwen3_forward.3}
  #allocation0 [shape = 'u32[]', space=smem, size = 0x4, offset = 0x4, fixed_abs, tag = 'smem constant byte address 0x4 - core index']
  #allocation1 [shape = 'u32[72,128]{1,0:T(1,128)}', space=vmem, size = 0x9000, scoped, tag = 'internal scratch']
  %s0 = inlined_call_operand.vmem [shape: f32[16,64], index: 0, kind: input, shape index: {}]
  %s1 = inlined_call_operand.vmem [shape: f32[1,64], index: 1, kind: input, shape index: {}]
  %s2 = inlined_call_operand.vmem [shape: bf16[64,128], index: 2, kind: input, shape index: {}]
  %s3 = inlined_call_operand.hbm [shape: f32[16,128], index: 3, kind: output, shape index: {}]
  %s4 = sld [smem:[#allocation0]]
  $region22: #{qwen3_forward.3} parent=0
    _
  %s6 = ssub.s32 1, %s4
  %s7 = scalar_select 0, %s6, %s4
  $region1: #{qwen3_forward.3} parent=0
    #allocation2 [shape = 'u8[8192]{0}', space=vmem, size = 0x2000, scoped, tag = 'output window, operand 0, single buffered']
    #allocation3 [shape = 's32[1]{0}', space=sflag, size = 0x4, scoped, tag = 'scoped memory for qwen3_forward.3']
    %8 = vsyncpa [#allocation3], 0
    // Predicated region
    $region2: #{qwen3_forward.3} parent=1 // pred_check
      _
    $region3: #{qwen3_forward.3} parent=1 // pred_check_branch
      %10 = sbr.rel (0) target = $region5
    $region4: #{qwen3_forward.3} parent=1 // pred_region
      _
    $region5: #{qwen3_forward.3} parent=1 // pred_fallthru
      _
    // Predicated region
    $region6: #{qwen3_forward.3} parent=1 // pred_check
      _
    $region7: #{qwen3_forward.3} parent=1 // pred_check_branch
      %12 = sbr.rel (0) target = $region9
    $region8: #{qwen3_forward.3} parent=1 // pred_region
      _
    $region9: #{qwen3_forward.3} parent=1 // pred_fallthru
      _
    // Predicated region
    $region10: #{qwen3_forward.3} parent=1 // pred_check
      _
    $region11: #{qwen3_forward.3} parent=1 // pred_check_branch
      %14 = sbr.rel (0) target = $region13
    $region12: #{qwen3_forward.3} parent=1 // pred_region
      _
    $region13: #{qwen3_forward.3} parent=1 // pred_fallthru
      _
    %v16 = vld [vmem:[%s0] sm:$0xff]
    %v17 = vld [vmem:[%s0 + $0x8] sm:$0xff]
    %v18 = vld [vmem:[%s1] sm:$0x1]
    %v19 = vmul.f32 %v16, %v16
    %v20 = vmul.f32 %v17, %v17
    %vm21 = vcmask 523264
    %v22 = vsel %vm21, %v19, 0.0
    %23 = vadd.xlane.f32.xlu0 %v22
    %v24 = vpop.xlane.xlu0 %23
    %v25 = vsel %vm21, %v20, 0.0
    %26 = vadd.xlane.f32.xlu0 %v25
    %v27 = vpop.xlane.xlu0 %26
    %v28 = vrcp.pop 64.0
    %v29 = vmul.f32 64.0, %v28
    %v30 = vsub.f32 1.0, %v29
    %v31 = vmul.f32 %v28, %v30
    %v32 = vadd.f32 %v28, %v31
    %vm33 = vweird.f32 %v28
    %v34 = vsel %vm33, %v28, %v32
    %v35 = vmul.f32 %v24, %v34
    %v36 = vmul.f32 %v27, %v34
    %v37 = vadd.f32 %v35, 1e-06
    %v38 = vadd.f32 %v36, 1e-06
    %v39 = vrsqrt.pop %v37
    %v40 = vmul.f32 %v39, %v37
    %v41 = vmul.f32 %v40, %v39
    %v42 = vmul.f32 0.5, %v41
    %v43 = vsub.f32 1.5, %v42
    %v44 = vmul.f32 %v39, %v43
    %vm45 = vweird.f32 %v37
    %vm46 = vweird.f32 %v39
    %vm47 = vmor %vm45, %vm46
    %v48 = vsel %vm47, %v39, %v44
    %v49 = vrsqrt.pop %v38
    %v50 = vmul.f32 %v49, %v38
    %v51 = vmul.f32 %v50, %v49
    %v52 = vmul.f32 0.5, %v51
    %v53 = vsub.f32 1.5, %v52
    %v54 = vmul.f32 %v49, %v53
    %vm55 = vweird.f32 %v38
    %vm56 = vweird.f32 %v49
    %vm57 = vmor %vm55, %vm56
    %v58 = vsel %vm57, %v49, %v54
    %v59 = vmul.f32 %v16, %v48
    %v60 = vmul.f32 %v17, %v58
    %v62 = vperm.slane %v18, 0
    %v64 = vmul.f32 %v59, %v62
    %v65 = vmul.f32 %v60, %v62
    %v66 = vpack.c.bf16 %v65, %v64
    %v67 = vld [vmem:[%s2] sm:$0xf]
    %v68 = vld [vmem:[%s2 + $0x4] sm:$0xf]
    %v69 = vld [vmem:[%s2 + $0x8] sm:$0xf]
    %v70 = vld [vmem:[%s2 + $0xc] sm:$0xf]
    %v71 = vld [vmem:[%s2 + $0x10] sm:$0xf]
    %v72 = vld [vmem:[%s2 + $0x14] sm:$0xf]
    %v73 = vld [vmem:[%s2 + $0x18] sm:$0xf]
    %v74 = vld [vmem:[%s2 + $0x1c] sm:$0xf]
    %v83 = vunpack.c.l.b16 %v67
    %v84 = vunpack.c.l.b16 %v68
    %v85 = vunpack.c.l.b16 %v69
    %v86 = vunpack.c.l.b16 %v70
    %v87 = vunpack.c.l.b16 %v71
    %v88 = vunpack.c.l.b16 %v72
    %v89 = vunpack.c.l.b16 %v73
    %v90 = vunpack.c.l.b16 %v74
    %v91 = vpack.c.b16 %v84, %v83
    %v92 = vpack.c.b16 %v86, %v85
    %v93 = vpack.c.b16 %v88, %v87
    %v94 = vpack.c.b16 %v90, %v89
    %v100 = vsel %vm21, %v66, 0
    %102 = vmatpush.bf16.msra.mxu0 0
    %103 = vmatpush.bf16.msra.mxu0 0
    %104 = vmatpush.bf16.msra.mxu0 0
    %105 = vmatpush.bf16.msra.mxu0 0
    %106 = vmatpush.bf16.msra.mxu0 %v94
    %107 = vmatpush.bf16.msra.mxu0 %v93
    %108 = vmatpush.bf16.msra.mxu0 %v92
    %109 = vmatpush.bf16.msra.mxu0 %v91
    %110 = vmatmul.bf16.gmra.mxu0 %v100
    %v111 = vpop.f32.mrf.mxu0
    %v112 = vadd.f32 0.0, %v111
    %v113 = vpop.f32.mrf.mxu0
    %v114 = vadd.f32 0.0, %v113
    %115 = vdwg.mxu0
    %116 = vst [vmem:[#allocation2] sm:$0xff] %v112
    %117 = vst [vmem:[#allocation2 + $0x8] sm:$0xff] %v114
    // Predicated region
    $region14: #{qwen3_forward.3} parent=1 // pred_check
      _
    $region15: #{qwen3_forward.3} parent=1 // pred_check_branch
      %119 = sbr.rel (0) target = $region17
    $region16: #{qwen3_forward.3} parent=1 // pred_region
      %121 = vsyncadd [#allocation3], 0
      %s122 = sshll.u32 [#allocation2], 4
      %s123 = int_to_ptr.vmem [resolvable:$true] %s122
      %s124 = sshll.u32 %s3, 4
      %s125 = int_to_ptr.hbm [resolvable:$true] %s124
      %130 = dma.vmem_to_hbm [thread:$0]  %s123, 256, %s125, [#allocation3], 128, 128, 8
    $region17: #{qwen3_forward.3} parent=1 // pred_fallthru
      _
    // Predicated region
    $region18: #{qwen3_forward.3} parent=1 // pred_check
      _
    $region19: #{qwen3_forward.3} parent=1 // pred_check_branch
      %132 = sbr.rel (0) target = $region21
    $region20: #{qwen3_forward.3} parent=1 // pred_region
      %134 = dma.done [#allocation3], 256
    $region21: #{qwen3_forward.3} parent=1 // pred_fallthru
      _
    %135 = vsyncpa [#allocation3], 1

// kernel: qwen3_forward.2
$region0: #{qwen3_forward.2}
  #allocation0 [shape = 'u32[]', space=smem, size = 0x4, offset = 0x4, fixed_abs, tag = 'smem constant byte address 0x4 - core index']
  #allocation1 [shape = 'u32[72,128]{1,0:T(1,128)}', space=vmem, size = 0x9000, scoped, tag = 'internal scratch']
  #allocation2 [shape = 'f32[16,64]{1,0:T(8,128)}', space=vmem, size = 0x2000, scoped, tag = 'scratch operand']
  %s0 = inlined_call_operand.vmem [shape: f32[16,64], index: 0, kind: input, shape index: {}]
  %s1 = inlined_call_operand.vmem [shape: f32[16,16], index: 1, kind: input, shape index: {}]
  %s2 = inlined_call_operand.vmem [shape: f32[16,128], index: 2, kind: input, shape index: {}]
  %s3 = inlined_call_operand.vmem [shape: f32[16,128], index: 3, kind: input, shape index: {}]
  %s4 = inlined_call_operand.vmem [shape: f32[16,64], index: 4, kind: input, shape index: {}]
  %s5 = inlined_call_operand.vmem [shape: f32[16,64], index: 5, kind: input, shape index: {}]
  %s6 = inlined_call_operand.vmem [shape: bf16[128,128], index: 6, kind: input, shape index: {}]
  %s7 = inlined_call_operand.vmem [shape: bf16[64,64], index: 7, kind: input, shape index: {}]
  %s8 = inlined_call_operand.vmem [shape: f32[128,128], index: 8, kind: input, shape index: {}]
  %s9 = inlined_call_operand.vmem [shape: f32[64,64], index: 9, kind: input, shape index: {}]
  %s10 = inlined_call_operand.vmem [shape: f32[2,8,128], index: 10, kind: input, shape index: {}]
  %s11 = inlined_call_operand.vmem [shape: bf16[2,64,256], index: 11, kind: input, shape index: {}]
  %s12 = inlined_call_operand.vmem [shape: bf16[2,4,32,64], index: 12, kind: input, shape index: {}]
  %s13 = inlined_call_operand.vmem [shape: bf16[2,64,256], index: 13, kind: input, shape index: {}]
  %s14 = inlined_call_operand.vmem [shape: bf16[2,128,64], index: 14, kind: input, shape index: {}]
  %s15 = inlined_call_operand.vmem [shape: f32[16,64], index: 15, kind: output, shape index: {}]
  %s16 = sld [smem:[#allocation0]]
  $region101: #{qwen3_forward.2} parent=0
    _
  %s18 = ssub.s32 1, %s16
  %s19 = scalar_select 0, %s18, %s16
  loop: start=0, step=1, limit=4
  $region2: #{qwen3_forward.2} parent=0 // loop_pre_header
    _
  $region3: #{qwen3_forward.2} parent=0 // loop_header
    %s21 = sphi 0, %s25
    %p22 = scmp.ge.s32.totalorder %s21, 4
    %s29 = sphi 0, %s29
    %s31 = sphi 0, %s29
    %s32 = sphi 0, %s31
    %s46 = sphi 0, %s32
    %s50 = sphi 0, %s50
    %s52 = sphi 0, %s50
    %s53 = sphi 0, %s52
    %s67 = sphi 0, %s53
    %s71 = sphi 0, %s71
    %s73 = sphi 0, %s71
    %s74 = sphi 0, %s73
    %s88 = sphi 0, %s74
    %s92 = sphi 0, %s92
    %s94 = sphi 0, %s92
    %s95 = sphi 0, %s94
    %s109 = sphi 0, %s95
    %s113 = sphi 0, %s113
    %s115 = sphi 0, %s113
    %s116 = sphi 0, %s115
    %s130 = sphi 0, %s116
    %s134 = sphi 0, %s134
    %s136 = sphi 0, %s134
    %s137 = sphi 0, %s136
    %s151 = sphi 0, %s137
    %s155 = sphi 0, %s155
    %s157 = sphi 0, %s155
    %s158 = sphi 0, %s157
    %s172 = sphi 0, %s158
    %s176 = sphi 0, %s176
    %s178 = sphi 0, %s176
    %s179 = sphi 0, %s178
    %s193 = sphi 0, %s179
    %s197 = sphi 0, %s197
    %s199 = sphi 0, %s197
    %s200 = sphi 0, %s199
    %s214 = sphi 0, %s200
    %s218 = sphi 0, %s218
    %s220 = sphi 0, %s218
    %s221 = sphi 0, %s220
    %s235 = sphi 0, %s221
    %s241 = sphi 0, %s243
    %s244 = sphi 0, %s241
    %s245 = sphi 0, %s244
    %s261 = sphi 0, %s245
    %s267 = sphi 0, %s269
    %s270 = sphi 0, %s267
    %s271 = sphi 0, %s270
    %s287 = sphi 0, %s271
    %s293 = sphi 0, %s295
    %s296 = sphi 0, %s293
    %s297 = sphi 0, %s296
    %s313 = sphi 0, %s297
    %s319 = sphi 0, %s321
    %s322 = sphi 0, %s319
    %s323 = sphi 0, %s322
    %s339 = sphi 0, %s323
    %s345 = sphi 0, %s347
    %s348 = sphi 0, %s345
    %s349 = sphi 0, %s348
    %s365 = sphi 0, %s349
    %s369 = sphi 0, %s369
    %s371 = sphi 0, %s369
    %s372 = sphi 0, %s371
    %s386 = sphi 0, %s372
  $region4: #{qwen3_forward.2} parent=0 // loop_header_branch
    %24 = sbr.rel (%p22) target = $region8
  $region5: #{qwen3_forward.2} parent=0 // loop_body
    %s26 = ssub.s32 %s21, 1
    %s27 = ssub.s32 %s21, 2
    %s28 = sadd.s32 %s21, 1
    %s30 = sadd.s32 %s29, 1
    %p33 = scmp.eq.s32.totalorder %s21, 1
    %p34 = scmp.ne.s32.totalorder %s29, %s31
    %p35 = scmp.eq.s32.totalorder %s21, 0
    %p36 = por %p34, %p35
    %p37 = scmp.ne.s32.totalorder %s29, %s31
    %p38 = scmp.eq.s32.totalorder %s26, 1
    %p39 = por %p37, %p38
    %p40 = scmp.ne.s32.totalorder %s31, %s32
    %p41 = scmp.eq.s32.totalorder %s26, 0
    %p42 = por %p40, %p41
    %p43 = scmp.ne.s32.totalorder %s31, %s32
    %p44 = scmp.eq.s32.totalorder %s27, 1
    %p45 = por %p43, %p44
    %p47 = scmp.ne.s32.totalorder %s32, %s46
    %p48 = scmp.eq.s32.totalorder %s27, 0
    %p49 = por %p47, %p48
    %s51 = sadd.s32 %s50, 1
    %p54 = scmp.eq.s32.totalorder %s21, 1
    %p55 = scmp.ne.s32.totalorder %s50, %s52
    %p56 = scmp.eq.s32.totalorder %s21, 0
    %p57 = por %p55, %p56
    %p58 = scmp.ne.s32.totalorder %s50, %s52
    %p59 = scmp.eq.s32.totalorder %s26, 1
    %p60 = por %p58, %p59
    %p61 = scmp.ne.s32.totalorder %s52, %s53
    %p62 = scmp.eq.s32.totalorder %s26, 0
    %p63 = por %p61, %p62
    %p64 = scmp.ne.s32.totalorder %s52, %s53
    %p65 = scmp.eq.s32.totalorder %s27, 1
    %p66 = por %p64, %p65
    %p68 = scmp.ne.s32.totalorder %s53, %s67
    %p69 = scmp.eq.s32.totalorder %s27, 0
    %p70 = por %p68, %p69
    %s72 = sadd.s32 %s71, 1
    %p75 = scmp.eq.s32.totalorder %s21, 1
    %p76 = scmp.ne.s32.totalorder %s71, %s73
    %p77 = scmp.eq.s32.totalorder %s21, 0
    %p78 = por %p76, %p77
    %p79 = scmp.ne.s32.totalorder %s71, %s73
    %p80 = scmp.eq.s32.totalorder %s26, 1
    %p81 = por %p79, %p80
    %p82 = scmp.ne.s32.totalorder %s73, %s74
    %p83 = scmp.eq.s32.totalorder %s26, 0
    %p84 = por %p82, %p83
    %p85 = scmp.ne.s32.totalorder %s73, %s74
    %p86 = scmp.eq.s32.totalorder %s27, 1
    %p87 = por %p85, %p86
    %p89 = scmp.ne.s32.totalorder %s74, %s88
    %p90 = scmp.eq.s32.totalorder %s27, 0
    %p91 = por %p89, %p90
    %s93 = sadd.s32 %s92, 1
    %p96 = scmp.eq.s32.totalorder %s21, 1
    %p97 = scmp.ne.s32.totalorder %s92, %s94
    %p98 = scmp.eq.s32.totalorder %s21, 0
    %p99 = por %p97, %p98
    %p100 = scmp.ne.s32.totalorder %s92, %s94
    %p101 = scmp.eq.s32.totalorder %s26, 1
    %p102 = por %p100, %p101
    %p103 = scmp.ne.s32.totalorder %s94, %s95
    %p104 = scmp.eq.s32.totalorder %s26, 0
    %p105 = por %p103, %p104
    %p106 = scmp.ne.s32.totalorder %s94, %s95
    %p107 = scmp.eq.s32.totalorder %s27, 1
    %p108 = por %p106, %p107
    %p110 = scmp.ne.s32.totalorder %s95, %s109
    %p111 = scmp.eq.s32.totalorder %s27, 0
    %p112 = por %p110, %p111
    %s114 = sadd.s32 %s113, 1
    %p117 = scmp.eq.s32.totalorder %s21, 1
    %p118 = scmp.ne.s32.totalorder %s113, %s115
    %p119 = scmp.eq.s32.totalorder %s21, 0
    %p120 = por %p118, %p119
    %p121 = scmp.ne.s32.totalorder %s113, %s115
    %p122 = scmp.eq.s32.totalorder %s26, 1
    %p123 = por %p121, %p122
    %p124 = scmp.ne.s32.totalorder %s115, %s116
    %p125 = scmp.eq.s32.totalorder %s26, 0
    %p126 = por %p124, %p125
    %p127 = scmp.ne.s32.totalorder %s115, %s116
    %p128 = scmp.eq.s32.totalorder %s27, 1
    %p129 = por %p127, %p128
    %p131 = scmp.ne.s32.totalorder %s116, %s130
    %p132 = scmp.eq.s32.totalorder %s27, 0
    %p133 = por %p131, %p132
    %s135 = sadd.s32 %s134, 1
    %p138 = scmp.eq.s32.totalorder %s21, 1
    %p139 = scmp.ne.s32.totalorder %s134, %s136
    %p140 = scmp.eq.s32.totalorder %s21, 0
    %p141 = por %p139, %p140
    %p142 = scmp.ne.s32.totalorder %s134, %s136
    %p143 = scmp.eq.s32.totalorder %s26, 1
    %p144 = por %p142, %p143
    %p145 = scmp.ne.s32.totalorder %s136, %s137
    %p146 = scmp.eq.s32.totalorder %s26, 0
    %p147 = por %p145, %p146
    %p148 = scmp.ne.s32.totalorder %s136, %s137
    %p149 = scmp.eq.s32.totalorder %s27, 1
    %p150 = por %p148, %p149
    %p152 = scmp.ne.s32.totalorder %s137, %s151
    %p153 = scmp.eq.s32.totalorder %s27, 0
    %p154 = por %p152, %p153
    %s156 = sadd.s32 %s155, 1
    %p159 = scmp.eq.s32.totalorder %s21, 1
    %p160 = scmp.ne.s32.totalorder %s155, %s157
    %p161 = scmp.eq.s32.totalorder %s21, 0
    %p162 = por %p160, %p161
    %p163 = scmp.ne.s32.totalorder %s155, %s157
    %p164 = scmp.eq.s32.totalorder %s26, 1
    %p165 = por %p163, %p164
    %p166 = scmp.ne.s32.totalorder %s157, %s158
    %p167 = scmp.eq.s32.totalorder %s26, 0
    %p168 = por %p166, %p167
    %p169 = scmp.ne.s32.totalorder %s157, %s158
    %p170 = scmp.eq.s32.totalorder %s27, 1
    %p171 = por %p169, %p170
    %p173 = scmp.ne.s32.totalorder %s158, %s172
    %p174 = scmp.eq.s32.totalorder %s27, 0
    %p175 = por %p173, %p174
    %s177 = sadd.s32 %s176, 1
    %p180 = scmp.eq.s32.totalorder %s21, 1
    %p181 = scmp.ne.s32.totalorder %s176, %s178
    %p182 = scmp.eq.s32.totalorder %s21, 0
    %p183 = por %p181, %p182
    %p184 = scmp.ne.s32.totalorder %s176, %s178
    %p185 = scmp.eq.s32.totalorder %s26, 1
    %p186 = por %p184, %p185
    %p187 = scmp.ne.s32.totalorder %s178, %s179
    %p188 = scmp.eq.s32.totalorder %s26, 0
    %p189 = por %p187, %p188
    %p190 = scmp.ne.s32.totalorder %s178, %s179
    %p191 = scmp.eq.s32.totalorder %s27, 1
    %p192 = por %p190, %p191
    %p194 = scmp.ne.s32.totalorder %s179, %s193
    %p195 = scmp.eq.s32.totalorder %s27, 0
    %p196 = por %p194, %p195
    %s198 = sadd.s32 %s197, 1
    %p201 = scmp.eq.s32.totalorder %s21, 1
    %p202 = scmp.ne.s32.totalorder %s197, %s199
    %p203 = scmp.eq.s32.totalorder %s21, 0
    %p204 = por %p202, %p203
    %p205 = scmp.ne.s32.totalorder %s197, %s199
    %p206 = scmp.eq.s32.totalorder %s26, 1
    %p207 = por %p205, %p206
    %p208 = scmp.ne.s32.totalorder %s199, %s200
    %p209 = scmp.eq.s32.totalorder %s26, 0
    %p210 = por %p208, %p209
    %p211 = scmp.ne.s32.totalorder %s199, %s200
    %p212 = scmp.eq.s32.totalorder %s27, 1
    %p213 = por %p211, %p212
    %p215 = scmp.ne.s32.totalorder %s200, %s214
    %p216 = scmp.eq.s32.totalorder %s27, 0
    %p217 = por %p215, %p216
    %s219 = sadd.s32 %s218, 1
    %p222 = scmp.eq.s32.totalorder %s21, 1
    %p223 = scmp.ne.s32.totalorder %s218, %s220
    %p224 = scmp.eq.s32.totalorder %s21, 0
    %p225 = por %p223, %p224
    %p226 = scmp.ne.s32.totalorder %s218, %s220
    %p227 = scmp.eq.s32.totalorder %s26, 1
    %p228 = por %p226, %p227
    %p229 = scmp.ne.s32.totalorder %s220, %s221
    %p230 = scmp.eq.s32.totalorder %s26, 0
    %p231 = por %p229, %p230
    %p232 = scmp.ne.s32.totalorder %s220, %s221
    %p233 = scmp.eq.s32.totalorder %s27, 1
    %p234 = por %p232, %p233
    %p236 = scmp.ne.s32.totalorder %s221, %s235
    %p237 = scmp.eq.s32.totalorder %s27, 0
    %p238 = por %p236, %p237
    %s239 = ssub.s32 %s21, %s28
    %p240 = scmp.eq.s32.totalorder %s239, 0
    %s242 = sadd.s32 %s241, 1
    %s243 = scalar_select %p240, %s241, %s242
    %p246 = pneg %p240
    %p247 = scmp.eq.s32.totalorder %s21, 1
    %p248 = por %p246, %p247
    %p249 = scmp.ne.s32.totalorder %s241, %s244
    %p250 = scmp.eq.s32.totalorder %s21, 0
    %p251 = por %p249, %p250
    %p252 = scmp.ne.s32.totalorder %s241, %s244
    %p253 = scmp.eq.s32.totalorder %s26, 1
    %p254 = por %p252, %p253
    %p255 = scmp.ne.s32.totalorder %s244, %s245
    %p256 = scmp.eq.s32.totalorder %s26, 0
    %p257 = por %p255, %p256
    %p258 = scmp.ne.s32.totalorder %s244, %s245
    %p259 = scmp.eq.s32.totalorder %s27, 1
    %p260 = por %p258, %p259
    %p262 = scmp.ne.s32.totalorder %s245, %s261
    %p263 = scmp.eq.s32.totalorder %s27, 0
    %p264 = por %p262, %p263
    %s265 = ssub.s32 %s21, %s28
    %p266 = scmp.eq.s32.totalorder %s265, 0
    %s268 = sadd.s32 %s267, 1
    %s269 = scalar_select %p266, %s267, %s268
    %p272 = pneg %p266
    %p273 = scmp.eq.s32.totalorder %s21, 1
    %p274 = por %p272, %p273
    %p275 = scmp.ne.s32.totalorder %s267, %s270
    %p276 = scmp.eq.s32.totalorder %s21, 0
    %p277 = por %p275, %p276
    %p278 = scmp.ne.s32.totalorder %s267, %s270
    %p279 = scmp.eq.s32.totalorder %s26, 1
    %p280 = por %p278, %p279
    %p281 = scmp.ne.s32.totalorder %s270, %s271
    %p282 = scmp.eq.s32.totalorder %s26, 0
    %p283 = por %p281, %p282
    %p284 = scmp.ne.s32.totalorder %s270, %s271
    %p285 = scmp.eq.s32.totalorder %s27, 1
    %p286 = por %p284, %p285
    %p288 = scmp.ne.s32.totalorder %s271, %s287
    %p289 = scmp.eq.s32.totalorder %s27, 0
    %p290 = por %p288, %p289
    %s291 = ssub.s32 %s21, %s28
    %p292 = scmp.eq.s32.totalorder %s291, 0
    %s294 = sadd.s32 %s293, 1
    %s295 = scalar_select %p292, %s293, %s294
    %p298 = pneg %p292
    %p299 = scmp.eq.s32.totalorder %s21, 1
    %p300 = por %p298, %p299
    %p301 = scmp.ne.s32.totalorder %s293, %s296
    %p302 = scmp.eq.s32.totalorder %s21, 0
    %p303 = por %p301, %p302
    %p304 = scmp.ne.s32.totalorder %s293, %s296
    %p305 = scmp.eq.s32.totalorder %s26, 1
    %p306 = por %p304, %p305
    %p307 = scmp.ne.s32.totalorder %s296, %s297
    %p308 = scmp.eq.s32.totalorder %s26, 0
    %p309 = por %p307, %p308
    %p310 = scmp.ne.s32.totalorder %s296, %s297
    %p311 = scmp.eq.s32.totalorder %s27, 1
    %p312 = por %p310, %p311
    %p314 = scmp.ne.s32.totalorder %s297, %s313
    %p315 = scmp.eq.s32.totalorder %s27, 0
    %p316 = por %p314, %p315
    %s317 = ssub.s32 %s21, %s28
    %p318 = scmp.eq.s32.totalorder %s317, 0
    %s320 = sadd.s32 %s319, 1
    %s321 = scalar_select %p318, %s319, %s320
    %p324 = pneg %p318
    %p325 = scmp.eq.s32.totalorder %s21, 1
    %p326 = por %p324, %p325
    %p327 = scmp.ne.s32.totalorder %s319, %s322
    %p328 = scmp.eq.s32.totalorder %s21, 0
    %p329 = por %p327, %p328
    %p330 = scmp.ne.s32.totalorder %s319, %s322
    %p331 = scmp.eq.s32.totalorder %s26, 1
    %p332 = por %p330, %p331
    %p333 = scmp.ne.s32.totalorder %s322, %s323
    %p334 = scmp.eq.s32.totalorder %s26, 0
    %p335 = por %p333, %p334
    %p336 = scmp.ne.s32.totalorder %s322, %s323
    %p337 = scmp.eq.s32.totalorder %s27, 1
    %p338 = por %p336, %p337
    %p340 = scmp.ne.s32.totalorder %s323, %s339
    %p341 = scmp.eq.s32.totalorder %s27, 0
    %p342 = por %p340, %p341
    %s343 = ssub.s32 %s21, %s28
    %p344 = scmp.eq.s32.totalorder %s343, 0
    %s346 = sadd.s32 %s345, 1
    %s347 = scalar_select %p344, %s345, %s346
    %p350 = pneg %p344
    %p351 = scmp.eq.s32.totalorder %s21, 1
    %p352 = por %p350, %p351
    %p353 = scmp.ne.s32.totalorder %s345, %s348
    %p354 = scmp.eq.s32.totalorder %s21, 0
    %p355 = por %p353, %p354
    %p356 = scmp.ne.s32.totalorder %s345, %s348
    %p357 = scmp.eq.s32.totalorder %s26, 1
    %p358 = por %p356, %p357
    %p359 = scmp.ne.s32.totalorder %s348, %s349
    %p360 = scmp.eq.s32.totalorder %s26, 0
    %p361 = por %p359, %p360
    %p362 = scmp.ne.s32.totalorder %s348, %s349
    %p363 = scmp.eq.s32.totalorder %s27, 1
    %p364 = por %p362, %p363
    %p366 = scmp.ne.s32.totalorder %s349, %s365
    %p367 = scmp.eq.s32.totalorder %s27, 0
    %p368 = por %p366, %p367
    %s370 = sadd.s32 %s369, 1
    %p373 = scmp.eq.s32.totalorder %s21, 1
    %p374 = scmp.ne.s32.totalorder %s369, %s371
    %p375 = scmp.eq.s32.totalorder %s21, 0
    %p376 = por %p374, %p375
    %p377 = scmp.ne.s32.totalorder %s369, %s371
    %p378 = scmp.eq.s32.totalorder %s26, 1
    %p379 = por %p377, %p378
    %p380 = scmp.ne.s32.totalorder %s371, %s372
    %p381 = scmp.eq.s32.totalorder %s26, 0
    %p382 = por %p380, %p381
    %p383 = scmp.ne.s32.totalorder %s371, %s372
    %p384 = scmp.eq.s32.totalorder %s27, 1
    %p385 = por %p383, %p384
    %p387 = scmp.ne.s32.totalorder %s372, %s386
    %p388 = scmp.eq.s32.totalorder %s27, 0
    %p389 = por %p387, %p388
    %p390 = scmp.le.s32.totalorder 1, %s21
    %p391 = scmp.lt.s32.totalorder %s21, 3
    %p392 = pnand %p390, %p391
    %p393 = pneg %p392
    // Predicated region
    $region9: #{qwen3_forward.2} parent=5 // pred_check
      _
    $region10: #{qwen3_forward.2} parent=5 // pred_check_branch
      %395 = sbr.rel (%p392) target = $region12
    $region11: #{qwen3_forward.2} parent=5 // pred_region
      %s396 = ssub.s32 %s21, 1
      // Predicated region
      $region13: #{qwen3_forward.2} parent=11 // pred_check
        %p397 = pneg %p42
      $region14: #{qwen3_forward.2} parent=11 // pred_check_branch
        %399 = sbr.rel (%p397) target = $region16
      $region15: #{qwen3_forward.2} parent=11 // pred_region
        _
      $region16: #{qwen3_forward.2} parent=11 // pred_fallthru
        _
      // Predicated region
      $region17: #{qwen3_forward.2} parent=11 // pred_check
        %p400 = pneg %p63
      $region18: #{qwen3_forward.2} parent=11 // pred_check_branch
        %402 = sbr.rel (%p400) target = $region20
      $region19: #{qwen3_forward.2} parent=11 // pred_region
        _
      $region20: #{qwen3_forward.2} parent=11 // pred_fallthru
        _
      // Predicated region
      $region21: #{qwen3_forward.2} parent=11 // pred_check
        %p403 = pneg %p84
      $region22: #{qwen3_forward.2} parent=11 // pred_check_branch
        %405 = sbr.rel (%p403) target = $region24
      $region23: #{qwen3_forward.2} parent=11 // pred_region
        _
      $region24: #{qwen3_forward.2} parent=11 // pred_fallthru
        _
      // Predicated region
      $region25: #{qwen3_forward.2} parent=11 // pred_check
        %p406 = pneg %p105
      $region26: #{qwen3_forward.2} parent=11 // pred_check_branch
        %408 = sbr.rel (%p406) target = $region28
      $region27: #{qwen3_forward.2} parent=11 // pred_region
        _
      $region28: #{qwen3_forward.2} parent=11 // pred_fallthru
        _
      // Predicated region
      $region29: #{qwen3_forward.2} parent=11 // pred_check
        %p409 = pneg %p126
      $region30: #{qwen3_forward.2} parent=11 // pred_check_branch
        %411 = sbr.rel (%p409) target = $region32
      $region31: #{qwen3_forward.2} parent=11 // pred_region
        _
      $region32: #{qwen3_forward.2} parent=11 // pred_fallthru
        _
      // Predicated region
      $region33: #{qwen3_forward.2} parent=11 // pred_check
        %p412 = pneg %p147
      $region34: #{qwen3_forward.2} parent=11 // pred_check_branch
        %414 = sbr.rel (%p412) target = $region36
      $region35: #{qwen3_forward.2} parent=11 // pred_region
        _
      $region36: #{qwen3_forward.2} parent=11 // pred_fallthru
        _
      // Predicated region
      $region37: #{qwen3_forward.2} parent=11 // pred_check
        %p415 = pneg %p168
      $region38: #{qwen3_forward.2} parent=11 // pred_check_branch
        %417 = sbr.rel (%p415) target = $region40
      $region39: #{qwen3_forward.2} parent=11 // pred_region
        _
      $region40: #{qwen3_forward.2} parent=11 // pred_fallthru
        _
      // Predicated region
      $region41: #{qwen3_forward.2} parent=11 // pred_check
        %p418 = pneg %p189
      $region42: #{qwen3_forward.2} parent=11 // pred_check_branch
        %420 = sbr.rel (%p418) target = $region44
      $region43: #{qwen3_forward.2} parent=11 // pred_region
        _
      $region44: #{qwen3_forward.2} parent=11 // pred_fallthru
        _
      // Predicated region
      $region45: #{qwen3_forward.2} parent=11 // pred_check
        %p421 = pneg %p210
      $region46: #{qwen3_forward.2} parent=11 // pred_check_branch
        %423 = sbr.rel (%p421) target = $region48
      $region47: #{qwen3_forward.2} parent=11 // pred_region
        _
      $region48: #{qwen3_forward.2} parent=11 // pred_fallthru
        _
      // Predicated region
      $region49: #{qwen3_forward.2} parent=11 // pred_check
        %p424 = pneg %p231
      $region50: #{qwen3_forward.2} parent=11 // pred_check_branch
        %426 = sbr.rel (%p424) target = $region52
      $region51: #{qwen3_forward.2} parent=11 // pred_region
        _
      $region52: #{qwen3_forward.2} parent=11 // pred_fallthru
        _
    $region12: #{qwen3_forward.2} parent=5 // pred_fallthru
      _
    %p427 = scmp.lt.s32.totalorder %s21, 2
    // Predicated region
    $region53: #{qwen3_forward.2} parent=5 // pred_check
      %p428 = pneg %p427
    $region54: #{qwen3_forward.2} parent=5 // pred_check_branch
      %430 = sbr.rel (%p428) target = $region56
    $region55: #{qwen3_forward.2} parent=5 // pred_region
      // Predicated region
      $region57: #{qwen3_forward.2} parent=55 // pred_check
        %p431 = pneg %p251
      $region58: #{qwen3_forward.2} parent=55 // pred_check_branch
        %433 = sbr.rel (%p431) target = $region60
      $region59: #{qwen3_forward.2} parent=55 // pred_region
        %p434 = scmp.lt.s32.totalorder %s21, 1
        %s435 = scalar_select %p434, %s21, 1
        %s436 = smul.addr %s435, 8
        %s437 = scalar_lea.vmem %s10, %s436
      $region60: #{qwen3_forward.2} parent=55 // pred_fallthru
        _
      // Predicated region
      $region61: #{qwen3_forward.2} parent=55 // pred_check
        %p438 = pneg %p277
      $region62: #{qwen3_forward.2} parent=55 // pred_check_branch
        %440 = sbr.rel (%p438) target = $region64
      $region63: #{qwen3_forward.2} parent=55 // pred_region
        %p441 = scmp.lt.s32.totalorder %s21, 1
        %s442 = scalar_select %p441, %s21, 1
        %s443 = smul.addr %s442, 16
        %s444 = smul.addr %s443, 4
        %s445 = scalar_lea.vmem %s11, %s444
      $region64: #{qwen3_forward.2} parent=55 // pred_fallthru
        _
      // Predicated region
      $region65: #{qwen3_forward.2} parent=55 // pred_check
        %p446 = pneg %p303
      $region66: #{qwen3_forward.2} parent=55 // pred_check_branch
        %448 = sbr.rel (%p446) target = $region68
      $region67: #{qwen3_forward.2} parent=55 // pred_region
        %p449 = scmp.lt.s32.totalorder %s21, 1
        %s450 = scalar_select %p449, %s21, 1
        %s451 = smul.addr %s450, 16
        %s452 = smul.addr %s451, 4
        %s453 = scalar_lea.vmem %s12, %s452
      $region68: #{qwen3_forward.2} parent=55 // pred_fallthru
        _
      // Predicated region
      $region69: #{qwen3_forward.2} parent=55 // pred_check
        %p454 = pneg %p329
      $region70: #{qwen3_forward.2} parent=55 // pred_check_branch
        %456 = sbr.rel (%p454) target = $region72
      $region71: #{qwen3_forward.2} parent=55 // pred_region
        %p457 = scmp.lt.s32.totalorder %s21, 1
        %s458 = scalar_select %p457, %s21, 1
        %s459 = smul.addr %s458, 16
        %s460 = smul.addr %s459, 4
        %s461 = scalar_lea.vmem %s13, %s460
      $region72: #{qwen3_forward.2} parent=55 // pred_fallthru
        _
      // Predicated region
      $region73: #{qwen3_forward.2} parent=55 // pred_check
        %p462 = pneg %p355
      $region74: #{qwen3_forward.2} parent=55 // pred_check_branch
        %464 = sbr.rel (%p462) target = $region76
      $region75: #{qwen3_forward.2} parent=55 // pred_region
        %p465 = scmp.lt.s32.totalorder %s21, 1
        %s466 = scalar_select %p465, %s21, 1
        %s467 = smul.addr %s466, 16
        %s468 = smul.addr %s467, 4
        %s469 = scalar_lea.vmem %s14, %s468
      $region76: #{qwen3_forward.2} parent=55 // pred_fallthru
        _
    $region56: #{qwen3_forward.2} parent=5 // pred_fallthru
      _
    %p470 = scmp.le.s32.totalorder 1, %s21
    %p471 = scmp.lt.s32.totalorder %s21, 3
    %p472 = pnand %p470, %p471
    %p473 = pneg %p472
    // Predicated region
    $region77: #{qwen3_forward.2} parent=5 // pred_check
      _
    $region78: #{qwen3_forward.2} parent=5 // pred_check_branch
      %475 = sbr.rel (%p472) target = $region80
    $region79: #{qwen3_forward.2} parent=5 // pred_region
      %s476 = ssub.s32 %s21, 1
      %p477 = pneg %p42
      %p478 = pneg %p39
      %p479 = pneg %p63
      %p480 = pneg %p60
      %p481 = pneg %p84
      %p482 = pneg %p81
      %p483 = pneg %p105
      %p484 = pneg %p102
      %p485 = pneg %p126
      %p486 = pneg %p123
      %p487 = pneg %p147
      %p488 = pneg %p144
      %p489 = pneg %p168
      %p490 = pneg %p165
      %p491 = pneg %p189
      %p492 = pneg %p186
      %p493 = pneg %p210
      %p494 = pneg %p207
      %p495 = pneg %p231
      %p496 = pneg %p228
      %p497 = scmp.lt.s32.totalorder %s26, 1
      %s498 = scalar_select %p497, %s26, 1
      %s499 = smul.addr %s498, 8
      %s500 = scalar_lea.vmem %s10, %s499
      %p501 = pneg %p257
      %p502 = pneg %p254
      %p503 = scmp.lt.s32.totalorder %s26, 1
      %s504 = scalar_select %p503, %s26, 1
      %s505 = smul.addr %s504, 16
      %s506 = smul.addr %s505, 4
      %s507 = scalar_lea.vmem %s11, %s506
      %p508 = pneg %p283
      %p509 = pneg %p280
      %p510 = scmp.lt.s32.totalorder %s26, 1
      %s511 = scalar_select %p510, %s26, 1
      %s512 = smul.addr %s511, 16
      %s513 = smul.addr %s512, 4
      %s514 = scalar_lea.vmem %s12, %s513
      %p515 = pneg %p309
      %p516 = pneg %p306
      %p517 = scmp.lt.s32.totalorder %s26, 1
      %s518 = scalar_select %p517, %s26, 1
      %s519 = smul.addr %s518, 16
      %s520 = smul.addr %s519, 4
      %s521 = scalar_lea.vmem %s13, %s520
      %p522 = pneg %p335
      %p523 = pneg %p332
      %p524 = scmp.lt.s32.totalorder %s26, 1
      %s525 = scalar_select %p524, %s26, 1
      %s526 = smul.addr %s525, 16
      %s527 = smul.addr %s526, 4
      %s528 = scalar_lea.vmem %s14, %s527
      %p529 = pneg %p361
      %p530 = pneg %p358
      %p531 = pneg %p382
      %p532 = pneg %p379
      %p533 = scmp.lt.s32.totalorder %s26, 1
      %s534 = scalar_select %p533, %s26, 1
      %s535 = smul.addr %s534, 8
      %s536 = scalar_lea.vmem %s10, %s535
      %p537 = scmp.lt.s32.totalorder %s26, 1
      %s538 = scalar_select %p537, %s26, 1
      %s539 = smul.addr %s538, 16
      %s540 = smul.addr %s539, 4
      %s541 = scalar_lea.vmem %s11, %s540
      %p542 = scmp.lt.s32.totalorder %s26, 1
      %s543 = scalar_select %p542, %s26, 1
      %s544 = smul.addr %s543, 16
      %s545 = smul.addr %s544, 4
      %s546 = scalar_lea.vmem %s12, %s545
      %p547 = scmp.lt.s32.totalorder %s26, 1
      %s548 = scalar_select %p547, %s26, 1
      %s549 = smul.addr %s548, 16
      %s550 = smul.addr %s549, 4
      %s551 = scalar_lea.vmem %s13, %s550
      %p552 = scmp.lt.s32.totalorder %s26, 1
      %s553 = scalar_select %p552, %s26, 1
      %s554 = smul.addr %s553, 16
      %s555 = smul.addr %s554, 4
      %s556 = scalar_lea.vmem %s14, %s555
      %p558 = scmp.eq.s32.totalorder %s26, 0
      // Predicated region
      $region81: #{qwen3_forward.2} parent=79 // pred_check
        %p559 = pneg %p558
      $region82: #{qwen3_forward.2} parent=79 // pred_check_branch
        %561 = sbr.rel (%p559) target = $region84
      $region83: #{qwen3_forward.2} parent=79 // pred_region
        %v562 = vld [vmem:[%s0] sm:$0xff]
        %v563 = vld [vmem:[%s0 + $0x8] sm:$0xff]
        %vm564 = vcmask 523264
        %565 = vst.msk [vmem:[#allocation2] sm:$0xff] %vm564, %v562
        %566 = vst.msk [vmem:[#allocation2 + $0x8] sm:$0xff] %vm564, %v563
      $region84: #{qwen3_forward.2} parent=79 // pred_fallthru
        _
      %v567 = vld [vmem:[#allocation2] sm:$0xff]
      %v568 = vld [vmem:[#allocation2 + $0x8] sm:$0xff]
      %v569 = vld [vmem:[%s536] sm:$0xff]
      %v570 = vmul.f32 %v567, %v567
      %v571 = vmul.f32 %v568, %v568
      %vm572 = vcmask 523264
      %v573 = vsel %vm572, %v570, 0.0
      %574 = vadd.xlane.f32.xlu0 %v573
      %v575 = vpop.xlane.xlu0 %574
      %v576 = vsel %vm572, %v571, 0.0
      %577 = vadd.xlane.f32.xlu0 %v576
      %v578 = vpop.xlane.xlu0 %577
      %v579 = vrcp.pop 64.0
      %v580 = vmul.f32 64.0, %v579
      %v581 = vsub.f32 1.0, %v580
      %v582 = vmul.f32 %v579, %v581
      %v583 = vadd.f32 %v579, %v582
      %vm584 = vweird.f32 %v579
      %v585 = vsel %vm584, %v579, %v583
      %v586 = vmul.f32 %v575, %v585
      %v587 = vmul.f32 %v578, %v585
      %v588 = vadd.f32 %v586, 1e-06
      %v589 = vadd.f32 %v587, 1e-06
      %v590 = vrsqrt.pop %v588
      %v591 = vmul.f32 %v590, %v588
      %v592 = vmul.f32 %v591, %v590
      %v593 = vmul.f32 0.5, %v592
      %v594 = vsub.f32 1.5, %v593
      %v595 = vmul.f32 %v590, %v594
      %vm596 = vweird.f32 %v588
      %vm597 = vweird.f32 %v590
      %vm598 = vmor %vm596, %vm597
      %v599 = vsel %vm598, %v590, %v595
      %v600 = vrsqrt.pop %v589
      %v601 = vmul.f32 %v600, %v589
      %v602 = vmul.f32 %v601, %v600
      %v603 = vmul.f32 0.5, %v602
      %v604 = vsub.f32 1.5, %v603
      %v605 = vmul.f32 %v600, %v604
      %vm606 = vweird.f32 %v589
      %vm607 = vweird.f32 %v600
      %vm608 = vmor %vm606, %vm607
      %v609 = vsel %vm608, %v600, %v605
      %v610 = vmul.f32 %v567, %v599
      %v611 = vmul.f32 %v568, %v609
      %v612 = vperm.slane %v569, 0
      %v613 = vmul.f32 %v610, %v612
      %v614 = vmul.f32 %v611, %v612
      %v615 = vpack.c.bf16 %v614, %v613
      %v616 = vld [vmem:[%s541] sm:$0xff]
      %v617 = vld [vmem:[%s541 + $0x8] sm:$0xff]
      %v618 = vld [vmem:[%s541 + $0x10] sm:$0xff]
      %v619 = vld [vmem:[%s541 + $0x18] sm:$0xff]
      %v620 = vld [vmem:[%s541 + $0x20] sm:$0xff]
      %v621 = vld [vmem:[%s541 + $0x28] sm:$0xff]
      %v622 = vld [vmem:[%s541 + $0x30] sm:$0xff]
      %v623 = vld [vmem:[%s541 + $0x38] sm:$0xff]
      %v632 = vunpack.c.l.b16 %v616
      %v633 = vunpack.c.h.b16 %v616
      %v634 = vunpack.c.l.b16 %v617
      %v635 = vunpack.c.h.b16 %v617
      %v636 = vunpack.c.l.b16 %v618
      %v637 = vunpack.c.h.b16 %v618
      %v638 = vunpack.c.l.b16 %v619
      %v639 = vunpack.c.h.b16 %v619
      %v640 = vunpack.c.l.b16 %v620
      %v641 = vunpack.c.h.b16 %v620
      %v642 = vunpack.c.l.b16 %v621
      %v643 = vunpack.c.h.b16 %v621
      %v644 = vunpack.c.l.b16 %v622
      %v645 = vunpack.c.h.b16 %v622
      %v646 = vunpack.c.l.b16 %v623
      %v647 = vunpack.c.h.b16 %v623
      %v648 = vpack.c.b16 %v634, %v632
      %v649 = vpack.c.b16 %v635, %v633
      %v650 = vpack.c.b16 %v638, %v636
      %v651 = vpack.c.b16 %v639, %v637
      %v652 = vpack.c.b16 %v642, %v640
      %v653 = vpack.c.b16 %v643, %v641
      %v654 = vpack.c.b16 %v646, %v644
      %v655 = vpack.c.b16 %v647, %v645
      %v665 = vsel %vm572, %v615, 0
      %667 = vmatpush.bf16.msra.mxu0 0
      %668 = vmatpush.bf16.msra.mxu0 0
      %669 = vmatpush.bf16.msra.mxu0 0
      %670 = vmatpush.bf16.msra.mxu0 0
      %671 = vmatpush.bf16.msra.mxu0 %v654
      %672 = vmatpush.bf16.msra.mxu0 %v652
      %673 = vmatpush.bf16.msra.mxu0 %v650
      %674 = vmatpush.bf16.msra.mxu0 %v648
      %675 = vmatmul.bf16.gmra.mxu0 %v665
      %v676 = vpop.f32.mrf.mxu0
      %v677 = vadd.f32 0.0, %v676
      %v678 = vpop.f32.mrf.mxu0
      %v679 = vadd.f32 0.0, %v678
      %680 = vdwg.mxu0
      %681 = vmatpush.bf16.msra.mxu0 0
      %682 = vmatpush.bf16.msra.mxu0 0
      %683 = vmatpush.bf16.msra.mxu0 0
      %684 = vmatpush.bf16.msra.mxu0 0
      %685 = vmatpush.bf16.msra.mxu0 %v655
      %686 = vmatpush.bf16.msra.mxu0 %v653
      %687 = vmatpush.bf16.msra.mxu0 %v651
      %688 = vmatpush.bf16.msra.mxu0 %v649
      %689 = vmatmul.bf16.gmra.mxu0 %v665
      %v690 = vpop.f32.mrf.mxu0
      %v691 = vadd.f32 0.0, %v690
      %v692 = vpop.f32.mrf.mxu0
      %v693 = vadd.f32 0.0, %v692
      %694 = vdwg.mxu0
      %v695 = vld [vmem:[%s8] sm:$0xff]
      %v696 = vld [vmem:[%s8 + $0x8] sm:$0xff]
      %v697 = vld [vmem:[%s8 + $0x10] sm:$0xff]
      %v698 = vld [vmem:[%s8 + $0x18] sm:$0xff]
      %v699 = vld [vmem:[%s8 + $0x20] sm:$0xff]
      %v700 = vld [vmem:[%s8 + $0x28] sm:$0xff]
      %v701 = vld [vmem:[%s8 + $0x30] sm:$0xff]
      %v702 = vld [vmem:[%s8 + $0x38] sm:$0xff]
      %v703 = vld [vmem:[%s8 + $0x40] sm:$0xff]
      %v704 = vld [vmem:[%s8 + $0x48] sm:$0xff]
      %v705 = vld [vmem:[%s8 + $0x50] sm:$0xff]
      %v706 = vld [vmem:[%s8 + $0x58] sm:$0xff]
      %v707 = vld [vmem:[%s8 + $0x60] sm:$0xff]
      %v708 = vld [vmem:[%s8 + $0x68] sm:$0xff]
      %v709 = vld [vmem:[%s8 + $0x70] sm:$0xff]
      %v710 = vld [vmem:[%s8 + $0x78] sm:$0xff]
      %v711 = vld [vmem:[%s6] sm:$0xf]
      %v712 = vld [vmem:[%s6 + $0x4] sm:$0xf]
      %v713 = vld [vmem:[%s6 + $0x8] sm:$0xf]
      %v714 = vld [vmem:[%s6 + $0xc] sm:$0xf]
      %v715 = vld [vmem:[%s6 + $0x10] sm:$0xf]
      %v716 = vld [vmem:[%s6 + $0x14] sm:$0xf]
      %v717 = vld [vmem:[%s6 + $0x18] sm:$0xf]
      %v718 = vld [vmem:[%s6 + $0x1c] sm:$0xf]
      %v719 = vld [vmem:[%s6 + $0x20] sm:$0xf]
      %v720 = vld [vmem:[%s6 + $0x24] sm:$0xf]
      %v721 = vld [vmem:[%s6 + $0x28] sm:$0xf]
      %v722 = vld [vmem:[%s6 + $0x2c] sm:$0xf]
      %v723 = vld [vmem:[%s6 + $0x30] sm:$0xf]
      %v724 = vld [vmem:[%s6 + $0x34] sm:$0xf]
      %v725 = vld [vmem:[%s6 + $0x38] sm:$0xf]
      %v726 = vld [vmem:[%s6 + $0x3c] sm:$0xf]
      %v727 = vld [vmem:[%s2] sm:$0xff]
      %v728 = vld [vmem:[%s2 + $0x8] sm:$0xff]
      %v729 = vld [vmem:[%s3] sm:$0xff]
      %v730 = vld [vmem:[%s3 + $0x8] sm:$0xff]
      %v731 = vmul.f32 %v677, %v677
      %v732 = vmul.f32 %v679, %v679
      %733 = vmatpush.msra.mxu0 %v710
      %734 = vmatpush.msra.mxu0 %v709
      %735 = vmatpush.msra.mxu0 %v708
      %736 = vmatpush.msra.mxu0 %v707
      %737 = vmatpush.msra.mxu0 %v706
      %738 = vmatpush.msra.mxu0 %v705
      %739 = vmatpush.msra.mxu0 %v704
      %740 = vmatpush.msra.mxu0 %v703
      %741 = vmatpush.msra.mxu0 %v702
      %742 = vmatpush.msra.mxu0 %v701
      %743 = vmatpush.msra.mxu0 %v700
      %744 = vmatpush.msra.mxu0 %v699
      %745 = vmatpush.msra.mxu0 %v698
      %746 = vmatpush.msra.mxu0 %v697
      %747 = vmatpush.msra.mxu0 %v696
      %748 = vmatpush.msra.mxu0 %v695
      %749 = vmatmul.f32.gmra.mxu0 %v731
      %v750 = vpop.f32.mrf.mxu0
      %v751 = vadd.f32 0.0, %v750
      %752 = vmatmul.f32.gmra.mxu0 %v732
      %v753 = vpop.f32.mrf.mxu0
      %v754 = vadd.f32 0.0, %v753
      %755 = vdwg.mxu0
      %v756 = vmul.f32 %v751, 0.03125
      %v757 = vmul.f32 %v754, 0.03125
      %v758 = vadd.f32 %v756, 1e-06
      %v759 = vadd.f32 %v757, 1e-06
      %v760 = vrsqrt.pop %v758
      %v761 = vmul.f32 %v760, %v758
      %v762 = vmul.f32 %v761, %v760
      %v763 = vmul.f32 0.5, %v762
      %v764 = vsub.f32 1.5, %v763
      %v765 = vmul.f32 %v760, %v764
      %vm766 = vweird.f32 %v758
      %vm767 = vweird.f32 %v760
      %vm768 = vmor %vm766, %vm767
      %v769 = vsel %vm768, %v760, %v765
      %v770 = vrsqrt.pop %v759
      %v771 = vmul.f32 %v770, %v759
      %v772 = vmul.f32 %v771, %v770
      %v773 = vmul.f32 0.5, %v772
      %v774 = vsub.f32 1.5, %v773
      %v775 = vmul.f32 %v770, %v774
      %vm776 = vweird.f32 %v759
      %vm777 = vweird.f32 %v770
      %vm778 = vmor %vm776, %vm777
      %v779 = vsel %vm778, %v770, %v775
      %v780 = vmul.f32 %v677, %v769
      %v781 = vmul.f32 %v679, %v779
      %v782 = vperm.slane %v569, 2
      %v783 = vmul.f32 %v780, %v782
      %v784 = vmul.f32 %v781, %v782
      %v785 = vpack.c.bf16 %v784, %v783
      %v802 = vunpack.c.l.b16 %v711
      %v803 = vunpack.c.l.b16 %v712
      %v804 = vunpack.c.l.b16 %v713
      %v805 = vunpack.c.l.b16 %v714
      %v806 = vunpack.c.l.b16 %v715
      %v807 = vunpack.c.l.b16 %v716
      %v808 = vunpack.c.l.b16 %v717
      %v809 = vunpack.c.l.b16 %v718
      %v810 = vunpack.c.l.b16 %v719
      %v811 = vunpack.c.l.b16 %v720
      %v812 = vunpack.c.l.b16 %v721
      %v813 = vunpack.c.l.b16 %v722
      %v814 = vunpack.c.l.b16 %v723
      %v815 = vunpack.c.l.b16 %v724
      %v816 = vunpack.c.l.b16 %v725
      %v817 = vunpack.c.l.b16 %v726
      %v818 = vpack.c.b16 %v803, %v802
      %v819 = vpack.c.b16 %v805, %v804
      %v820 = vpack.c.b16 %v807, %v806
      %v821 = vpack.c.b16 %v809, %v808
      %v822 = vpack.c.b16 %v811, %v810
      %v823 = vpack.c.b16 %v813, %v812
      %v824 = vpack.c.b16 %v815, %v814
      %v825 = vpack.c.b16 %v817, %v816
      %834 = vmatpush.bf16.msra.mxu0 %v825
      %835 = vmatpush.bf16.msra.mxu0 %v824
      %836 = vmatpush.bf16.msra.mxu0 %v823
      %837 = vmatpush.bf16.msra.mxu0 %v822
      %838 = vmatpush.bf16.msra.mxu0 %v821
      %839 = vmatpush.bf16.msra.mxu0 %v820
      %840 = vmatpush.bf16.msra.mxu0 %v819
      %841 = vmatpush.bf16.msra.mxu0 %v818
      %842 = vmatmul.bf16.gmra.mxu0 %v785
      %v843 = vpop.f32.mrf.mxu0
      %v844 = vadd.f32 0.0, %v843
      %v845 = vpop.f32.mrf.mxu0
      %v846 = vadd.f32 0.0, %v845
      %847 = vdwg.mxu0
      %v848 = vmul.f32 %v783, %v727
      %v849 = vmul.f32 %v784, %v728
      %v850 = vmul.f32 %v844, %v729
      %v851 = vmul.f32 %v846, %v730
      %v852 = vadd.f32 %v848, %v850
      %v853 = vadd.f32 %v849, %v851
      %v854 = vld [vmem:[%s9] sm:$0xff]
      %v855 = vld [vmem:[%s9 + $0x8] sm:$0xff]
      %v856 = vld [vmem:[%s9 + $0x10] sm:$0xff]
      %v857 = vld [vmem:[%s9 + $0x18] sm:$0xff]
      %v858 = vld [vmem:[%s9 + $0x20] sm:$0xff]
      %v859 = vld [vmem:[%s9 + $0x28] sm:$0xff]
      %v860 = vld [vmem:[%s9 + $0x30] sm:$0xff]
      %v861 = vld [vmem:[%s9 + $0x38] sm:$0xff]
      %v862 = vld [vmem:[%s7] sm:$0xf]
      %v863 = vld [vmem:[%s7 + $0x4] sm:$0xf]
      %v864 = vld [vmem:[%s7 + $0x8] sm:$0xf]
      %v865 = vld [vmem:[%s7 + $0xc] sm:$0xf]
      %v866 = vld [vmem:[%s7 + $0x10] sm:$0xf]
      %v867 = vld [vmem:[%s7 + $0x14] sm:$0xf]
      %v868 = vld [vmem:[%s7 + $0x18] sm:$0xf]
      %v869 = vld [vmem:[%s7 + $0x1c] sm:$0xf]
      %v870 = vld [vmem:[%s4] sm:$0xff]
      %v871 = vld [vmem:[%s4 + $0x8] sm:$0xff]
      %v872 = vld [vmem:[%s5] sm:$0xff]
      %v873 = vld [vmem:[%s5 + $0x8] sm:$0xff]
      %v874 = vmul.f32 %v691, %v691
      %v875 = vmul.f32 %v693, %v693
      %v877 = vsel %vm572, %v874, 0
      %v880 = vsel %vm572, %v875, 0
      %882 = vmatpush.msra.mxu0 0.0
      %883 = vmatpush.msra.mxu0 0.0
      %884 = vmatpush.msra.mxu0 0.0
      %885 = vmatpush.msra.mxu0 0.0
      %886 = vmatpush.msra.mxu0 0.0
      %887 = vmatpush.msra.mxu0 0.0
      %888 = vmatpush.msra.mxu0 0.0
      %889 = vmatpush.msra.mxu0 0.0
      %890 = vmatpush.msra.mxu0 %v861
      %891 = vmatpush.msra.mxu0 %v860
      %892 = vmatpush.msra.mxu0 %v859
      %893 = vmatpush.msra.mxu0 %v858
      %894 = vmatpush.msra.mxu0 %v857
      %895 = vmatpush.msra.mxu0 %v856
      %896 = vmatpush.msra.mxu0 %v855
      %897 = vmatpush.msra.mxu0 %v854
      %898 = vmatmul.f32.gmra.mxu0 %v877
      %v899 = vpop.f32.mrf.mxu0
      %v900 = vadd.f32 0.0, %v899
      %901 = vmatmul.f32.gmra.mxu0 %v880
      %v902 = vpop.f32.mrf.mxu0
      %v903 = vadd.f32 0.0, %v902
      %904 = vdwg.mxu0
      %v905 = vmul.f32 %v900, 0.03125
      %v906 = vmul.f32 %v903, 0.03125
      %v907 = vadd.f32 %v905, 1e-06
      %v908 = vadd.f32 %v906, 1e-06
      %v909 = vrsqrt.pop %v907
      %v910 = vmul.f32 %v909, %v907
      %v911 = vmul.f32 %v910, %v909
      %v912 = vmul.f32 0.5, %v911
      %v913 = vsub.f32 1.5, %v912
      %v914 = vmul.f32 %v909, %v913
      %vm915 = vweird.f32 %v907
      %vm916 = vweird.f32 %v909
      %vm917 = vmor %vm915, %vm916
      %v918 = vsel %vm917, %v909, %v914
      %v919 = vrsqrt.pop %v908
      %v920 = vmul.f32 %v919, %v908
      %v921 = vmul.f32 %v920, %v919
      %v922 = vmul.f32 0.5, %v921
      %v923 = vsub.f32 1.5, %v922
      %v924 = vmul.f32 %v919, %v923
      %vm925 = vweird.f32 %v908
      %vm926 = vweird.f32 %v919
      %vm927 = vmor %vm925, %vm926
      %v928 = vsel %vm927, %v919, %v924
      %v929 = vmul.f32 %v691, %v918
      %v930 = vmul.f32 %v693, %v928
      %v931 = vperm.slane %v569, 3
      %v932 = vmul.f32 %v929, %v931
      %v933 = vmul.f32 %v930, %v931
      %v934 = vpack.c.bf16 %v933, %v932
      %v943 = vunpack.c.l.b16 %v862
      %v944 = vunpack.c.l.b16 %v863
      %v945 = vunpack.c.l.b16 %v864
      %v946 = vunpack.c.l.b16 %v865
      %v947 = vunpack.c.l.b16 %v866
      %v948 = vunpack.c.l.b16 %v867
      %v949 = vunpack.c.l.b16 %v868
      %v950 = vunpack.c.l.b16 %v869
      %v951 = vpack.c.b16 %v944, %v943
      %v952 = vpack.c.b16 %v946, %v945
      %v953 = vpack.c.b16 %v948, %v947
      %v954 = vpack.c.b16 %v950, %v949
      %v960 = vsel %vm572, %v934, 0
      %962 = vmatpush.bf16.msra.mxu0 0
      %963 = vmatpush.bf16.msra.mxu0 0
      %964 = vmatpush.bf16.msra.mxu0 0
      %965 = vmatpush.bf16.msra.mxu0 0
      %966 = vmatpush.bf16.msra.mxu0 %v954
      %967 = vmatpush.bf16.msra.mxu0 %v953
      %968 = vmatpush.bf16.msra.mxu0 %v952
      %969 = vmatpush.bf16.msra.mxu0 %v951
      %970 = vmatmul.bf16.gmra.mxu0 %v960
      %v971 = vpop.f32.mrf.mxu0
      %v972 = vadd.f32 0.0, %v971
      %v973 = vpop.f32.mrf.mxu0
      %v974 = vadd.f32 0.0, %v973
      %975 = vdwg.mxu0
      %v976 = vmul.f32 %v932, %v870
      %v977 = vmul.f32 %v933, %v871
      %v978 = vmul.f32 %v972, %v872
      %v979 = vmul.f32 %v974, %v873
      %v980 = vadd.f32 %v976, %v978
      %v981 = vadd.f32 %v977, %v979
      %v982 = vmul.f32 %v852, 0.17677669
      %v983 = vmul.f32 %v853, 0.17677669
      %986 = vrot.lane.b32.xlu0 %v982, 96
      %v987 = vpop.permute.xlu0 %986
      %988 = vrot.lane.b32.xlu0 %v983, 96
      %v989 = vpop.permute.xlu0 %988
      %992 = vrot.lane.b32.xlu0 %v982, 64
      %v993 = vpop.permute.xlu0 %992
      %994 = vrot.lane.b32.xlu0 %v983, 64
      %v995 = vpop.permute.xlu0 %994
      %998 = vrot.lane.b32.xlu0 %v982, 32
      %v999 = vpop.permute.xlu0 %998
      %1000 = vrot.lane.b32.xlu0 %v983, 32
      %v1001 = vpop.permute.xlu0 %1000
      %v1004 = vpack.c.bf16 %v982, %v982
      %v1005 = vpack.c.bf16 %v983, %v983
      %v1006 = vpack.c.bf16 %v987, %v987
      %v1007 = vpack.c.bf16 %v989, %v989
      %v1008 = vpack.c.bf16 %v993, %v993
      %v1009 = vpack.c.bf16 %v995, %v995
      %v1010 = vpack.c.bf16 %v999, %v999
      %v1011 = vpack.c.bf16 %v1001, %v1001
      %1014 = vrot.lane.b32.xlu0 %v980, 96
      %v1015 = vpop.permute.xlu0 %1014
      %1016 = vrot.lane.b32.xlu0 %v981, 96
      %v1017 = vpop.permute.xlu0 %1016
      %v1020 = vpack.c.bf16 %v980, %v980
      %v1021 = vpack.c.bf16 %v981, %v981
      %v1022 = vpack.c.bf16 %v1015, %v1015
      %v1023 = vpack.c.bf16 %v1017, %v1017
      %1026 = vrot.lane.b32.xlu0 %v691, 96
      %v1027 = vpop.permute.xlu0 %1026
      %1028 = vrot.lane.b32.xlu0 %v693, 96
      %v1029 = vpop.permute.xlu0 %1028
      %v1032 = vpack.c.bf16 %v691, %v691
      %v1033 = vpack.c.bf16 %v693, %v693
      %v1034 = vpack.c.bf16 %v1027, %v1027
      %v1035 = vpack.c.bf16 %v1029, %v1029
      %v1036 = vld [vmem:[%s1] sm:$0xff]
      %v1037 = vld [vmem:[%s1 + $0x8] sm:$0xff]
      %v1040 = vunpack.c.l.b16 %v1004
      %v1041 = vunpack.c.l.b16 %v1005
      %v1042 = vpack.c.b16 %v1041, %v1040
      %v1045 = vunpack.c.l.b16 %v1020
      %v1046 = vunpack.c.l.b16 %v1021
      %v1047 = vpack.c.b16 %v1046, %v1045
      %vm1048 = vcmask 261120
      %v1050 = vsel %vm1048, %v1042, 0
      %v1053 = vsel %vm1048, %v1047, 0
      %1055 = vmatpush.bf16.xpose.msra.mxu0 0
      %1056 = vmatpush.bf16.xpose.msra.mxu0 0
      %1057 = vmatpush.bf16.xpose.msra.mxu0 0
      %1058 = vmatpush.bf16.xpose.msra.mxu0 0
      %1059 = vmatpush.bf16.xpose.msra.mxu0 0
      %1060 = vmatpush.bf16.xpose.msra.mxu0 0
      %1061 = vmatpush.bf16.xpose.msra.mxu0 0
      %1062 = vmatpush.bf16.xpose.msra.mxu0 %v1053
      %1063 = vmatmul.bf16.gmra.mxu0 %v1050
      %v1064 = vpop.f32.mrf.mxu0
      %v1065 = vadd.f32 %v1036, %v1064
      %v1066 = vpop.f32.mrf.mxu0
      %v1067 = vadd.f32 %v1037, %v1066
      %1068 = vdwg.mxu0
      %v1071 = vunpack.c.l.b16 %v1006
      %v1072 = vunpack.c.l.b16 %v1007
      %v1073 = vpack.c.b16 %v1072, %v1071
      %v1075 = vsel %vm1048, %v1073, 0
      %1077 = vmatpush.bf16.xpose.msra.mxu0 0
      %1078 = vmatpush.bf16.xpose.msra.mxu0 0
      %1079 = vmatpush.bf16.xpose.msra.mxu0 0
      %1080 = vmatpush.bf16.xpose.msra.mxu0 0
      %1081 = vmatpush.bf16.xpose.msra.mxu0 0
      %1082 = vmatpush.bf16.xpose.msra.mxu0 0
      %1083 = vmatpush.bf16.xpose.msra.mxu0 0
      %1084 = vmatpush.bf16.xpose.msra.mxu0 %v1053
      %1085 = vmatmul.bf16.gmra.mxu0 %v1075
      %v1086 = vpop.f32.mrf.mxu0
      %v1087 = vadd.f32 %v1036, %v1086
      %v1088 = vpop.f32.mrf.mxu0
      %v1089 = vadd.f32 %v1037, %v1088
      %1090 = vdwg.mxu0
      %v1093 = vunpack.c.l.b16 %v1008
      %v1094 = vunpack.c.l.b16 %v1009
      %v1095 = vpack.c.b16 %v1094, %v1093
      %v1098 = vunpack.c.l.b16 %v1022
      %v1099 = vunpack.c.l.b16 %v1023
      %v1100 = vpack.c.b16 %v1099, %v1098
      %v1102 = vsel %vm1048, %v1095, 0
      %v1105 = vsel %vm1048, %v1100, 0
      %1107 = vmatpush.bf16.xpose.msra.mxu0 0
      %1108 = vmatpush.bf16.xpose.msra.mxu0 0
      %1109 = vmatpush.bf16.xpose.msra.mxu0 0
      %1110 = vmatpush.bf16.xpose.msra.mxu0 0
      %1111 = vmatpush.bf16.xpose.msra.mxu0 0
      %1112 = vmatpush.bf16.xpose.msra.mxu0 0
      %1113 = vmatpush.bf16.xpose.msra.mxu0 0
      %1114 = vmatpush.bf16.xpose.msra.mxu0 %v1105
      %1115 = vmatmul.bf16.gmra.mxu0 %v1102
      %v1116 = vpop.f32.mrf.mxu0
      %v1117 = vadd.f32 %v1036, %v1116
      %v1118 = vpop.f32.mrf.mxu0
      %v1119 = vadd.f32 %v1037, %v1118
      %1120 = vdwg.mxu0
      %v1123 = vunpack.c.l.b16 %v1010
      %v1124 = vunpack.c.l.b16 %v1011
      %v1125 = vpack.c.b16 %v1124, %v1123
      %v1127 = vsel %vm1048, %v1125, 0
      %1129 = vmatpush.bf16.xpose.msra.mxu0 0
      %1130 = vmatpush.bf16.xpose.msra.mxu0 0
      %1131 = vmatpush.bf16.xpose.msra.mxu0 0
      %1132 = vmatpush.bf16.xpose.msra.mxu0 0
      %1133 = vmatpush.bf16.xpose.msra.mxu0 0
      %1134 = vmatpush.bf16.xpose.msra.mxu0 0
      %1135 = vmatpush.bf16.xpose.msra.mxu0 0
      %1136 = vmatpush.bf16.xpose.msra.mxu0 %v1105
      %1137 = vmatmul.bf16.gmra.mxu0 %v1127
      %v1138 = vpop.f32.mrf.mxu0
      %v1139 = vadd.f32 %v1036, %v1138
      %v1140 = vpop.f32.mrf.mxu0
      %v1141 = vadd.f32 %v1037, %v1140
      %1142 = vdwg.mxu0
      %vm1143 = vcmask 130048
      %v1144 = vsel %vm1143, %v1065, -inf
      %1145 = vmax.xlane.f32.xlu0 %v1144
      %v1146 = vpop.xlane.xlu0 %1145
      %v1147 = vsel %vm1143, %v1067, -inf
      %1148 = vmax.xlane.f32.xlu0 %v1147
      %v1149 = vpop.xlane.xlu0 %1148
      %v1150 = vsel %vm1143, %v1087, -inf
      %1151 = vmax.xlane.f32.xlu0 %v1150
      %v1152 = vpop.xlane.xlu0 %1151
      %v1153 = vsel %vm1143, %v1089, -inf
      %1154 = vmax.xlane.f32.xlu0 %v1153
      %v1155 = vpop.xlane.xlu0 %1154
      %v1156 = vsel %vm1143, %v1117, -inf
      %1157 = vmax.xlane.f32.xlu0 %v1156
      %v1158 = vpop.xlane.xlu0 %1157
      %v1159 = vsel %vm1143, %v1119, -inf
      %1160 = vmax.xlane.f32.xlu0 %v1159
      %v1161 = vpop.xlane.xlu0 %1160
      %v1162 = vsel %vm1143, %v1139, -inf
      %1163 = vmax.xlane.f32.xlu0 %v1162
      %v1164 = vpop.xlane.xlu0 %1163
      %v1165 = vsel %vm1143, %v1141, -inf
      %1166 = vmax.xlane.f32.xlu0 %v1165
      %v1167 = vpop.xlane.xlu0 %1166
      %v1168 = vsub.f32 %v1065, %v1146
      %v1169 = vsub.f32 %v1067, %v1149
      %v1170 = vsub.f32 %v1087, %v1152
      %v1171 = vsub.f32 %v1089, %v1155
      %v1172 = vsub.f32 %v1117, %v1158
      %v1173 = vsub.f32 %v1119, %v1161
      %v1174 = vsub.f32 %v1139, %v1164
      %v1175 = vsub.f32 %v1141, %v1167
      %v1176 = vmul.f32 %v1168, 1.442695
      %v1177 = vpow.pop %v1176
      %v1178 = vmul.f32 %v1169, 1.442695
      %v1179 = vpow.pop %v1178
      %v1180 = vmul.f32 %v1170, 1.442695
      %v1181 = vpow.pop %v1180
      %v1182 = vmul.f32 %v1171, 1.442695
      %v1183 = vpow.pop %v1182
      %v1184 = vmul.f32 %v1172, 1.442695
      %v1185 = vpow.pop %v1184
      %v1186 = vmul.f32 %v1173, 1.442695
      %v1187 = vpow.pop %v1186
      %v1188 = vmul.f32 %v1174, 1.442695
      %v1189 = vpow.pop %v1188
      %v1190 = vmul.f32 %v1175, 1.442695
      %v1191 = vpow.pop %v1190
      %v1192 = vsel %vm1143, %v1177, 0.0
      %1193 = vadd.xlane.f32.xlu0 %v1192
      %v1194 = vpop.xlane.xlu0 %1193
      %v1195 = vsel %vm1143, %v1179, 0.0
      %1196 = vadd.xlane.f32.xlu0 %v1195
      %v1197 = vpop.xlane.xlu0 %1196
      %v1198 = vsel %vm1143, %v1181, 0.0
      %1199 = vadd.xlane.f32.xlu0 %v1198
      %v1200 = vpop.xlane.xlu0 %1199
      %v1201 = vsel %vm1143, %v1183, 0.0
      %1202 = vadd.xlane.f32.xlu0 %v1201
      %v1203 = vpop.xlane.xlu0 %1202
      %v1204 = vsel %vm1143, %v1185, 0.0
      %1205 = vadd.xlane.f32.xlu0 %v1204
      %v1206 = vpop.xlane.xlu0 %1205
      %v1207 = vsel %vm1143, %v1187, 0.0
      %1208 = vadd.xlane.f32.xlu0 %v1207
      %v1209 = vpop.xlane.xlu0 %1208
      %v1210 = vsel %vm1143, %v1189, 0.0
      %1211 = vadd.xlane.f32.xlu0 %v1210
      %v1212 = vpop.xlane.xlu0 %1211
      %v1213 = vsel %vm1143, %v1191, 0.0
      %1214 = vadd.xlane.f32.xlu0 %v1213
      %v1215 = vpop.xlane.xlu0 %1214
      %v1216 = vrcp.pop %v1194
      %v1217 = vrcp.pop %v1197
      %v1218 = vrcp.pop %v1200
      %v1219 = vrcp.pop %v1203
      %v1220 = vrcp.pop %v1206
      %v1221 = vrcp.pop %v1209
      %v1222 = vrcp.pop %v1212
      %v1223 = vrcp.pop %v1215
      %v1224 = vmul.f32 %v1177, %v1216
      %v1225 = vmul.f32 %v1179, %v1217
      %v1226 = vmul.f32 %v1181, %v1218
      %v1227 = vmul.f32 %v1183, %v1219
      %v1228 = vmul.f32 %v1185, %v1220
      %v1229 = vmul.f32 %v1187, %v1221
      %v1230 = vmul.f32 %v1189, %v1222
      %v1231 = vmul.f32 %v1191, %v1223
      %v1232 = vpack.c.bf16 %v1224, %v1224
      %v1233 = vpack.c.bf16 %v1225, %v1225
      %v1234 = vpack.c.bf16 %v1226, %v1226
      %v1235 = vpack.c.bf16 %v1227, %v1227
      %v1236 = vpack.c.bf16 %v1228, %v1228
      %v1237 = vpack.c.bf16 %v1229, %v1229
      %v1238 = vpack.c.bf16 %v1230, %v1230
      %v1239 = vpack.c.bf16 %v1231, %v1231
      %v1242 = vunpack.c.l.b16 %v1232
      %v1243 = vunpack.c.l.b16 %v1233
      %v1244 = vpack.c.b16 %v1243, %v1242
      %v1247 = vunpack.c.l.b16 %v1032
      %v1248 = vunpack.c.l.b16 %v1033
      %v1249 = vpack.c.b16 %v1248, %v1247
      %1250 = vrot.lane.b32.xlu0 %v1249, 64
      %v1251 = vpop.permute.xlu0 %1250
      %v1254 = vsel %vm1143, %v1244, 0
      %1256 = vmatpush.bf16.msra.mxu0 0
      %1257 = vmatpush.bf16.msra.mxu0 0
      %1258 = vmatpush.bf16.msra.mxu0 0
      %1259 = vmatpush.bf16.msra.mxu0 0
      %1260 = vmatpush.bf16.msra.mxu0 0
      %1261 = vmatpush.bf16.msra.mxu0 0
      %1262 = vmatpush.bf16.msra.mxu0 0
      %1263 = vmatpush.bf16.msra.mxu0 %v1251
      %1264 = vmatmul.bf16.gmra.mxu0 %v1254
      %v1265 = vpop.f32.mrf.mxu0
      %v1266 = vadd.f32 0.0, %v1265
      %v1267 = vpop.f32.mrf.mxu0
      %v1268 = vadd.f32 0.0, %v1267
      %1269 = vdwg.mxu0
      %v1272 = vunpack.c.l.b16 %v1234
      %v1273 = vunpack.c.l.b16 %v1235
      %v1274 = vpack.c.b16 %v1273, %v1272
      %v1276 = vsel %vm1143, %v1274, 0
      %1278 = vmatpush.bf16.msra.mxu0 0
      %1279 = vmatpush.bf16.msra.mxu0 0
      %1280 = vmatpush.bf16.msra.mxu0 0
      %1281 = vmatpush.bf16.msra.mxu0 0
      %1282 = vmatpush.bf16.msra.mxu0 0
      %1283 = vmatpush.bf16.msra.mxu0 0
      %1284 = vmatpush.bf16.msra.mxu0 0
      %1285 = vmatpush.bf16.msra.mxu0 %v1251
      %1286 = vmatmul.bf16.gmra.mxu0 %v1276
      %v1287 = vpop.f32.mrf.mxu0
      %v1288 = vadd.f32 0.0, %v1287
      %v1289 = vpop.f32.mrf.mxu0
      %v1290 = vadd.f32 0.0, %v1289
      %1291 = vdwg.mxu0
      %v1294 = vunpack.c.l.b16 %v1236
      %v1295 = vunpack.c.l.b16 %v1237
      %v1296 = vpack.c.b16 %v1295, %v1294
      %v1299 = vunpack.c.l.b16 %v1034
      %v1300 = vunpack.c.l.b16 %v1035
      %v1301 = vpack.c.b16 %v1300, %v1299
      %1302 = vrot.lane.b32.xlu0 %v1301, 64
      %v1303 = vpop.permute.xlu0 %1302
      %v1306 = vsel %vm1143, %v1296, 0
      %1308 = vmatpush.bf16.msra.mxu0 0
      %1309 = vmatpush.bf16.msra.mxu0 0
      %1310 = vmatpush.bf16.msra.mxu0 0
      %1311 = vmatpush.bf16.msra.mxu0 0
      %1312 = vmatpush.bf16.msra.mxu0 0
      %1313 = vmatpush.bf16.msra.mxu0 0
      %1314 = vmatpush.bf16.msra.mxu0 0
      %1315 = vmatpush.bf16.msra.mxu0 %v1303
      %1316 = vmatmul.bf16.gmra.mxu0 %v1306
      %v1317 = vpop.f32.mrf.mxu0
      %v1318 = vadd.f32 0.0, %v1317
      %v1319 = vpop.f32.mrf.mxu0
      %v1320 = vadd.f32 0.0, %v1319
      %1321 = vdwg.mxu0
      %v1324 = vunpack.c.l.b16 %v1238
      %v1325 = vunpack.c.l.b16 %v1239
      %v1326 = vpack.c.b16 %v1325, %v1324
      %v1328 = vsel %vm1143, %v1326, 0
      %1330 = vmatpush.bf16.msra.mxu0 0
      %1331 = vmatpush.bf16.msra.mxu0 0
      %1332 = vmatpush.bf16.msra.mxu0 0
      %1333 = vmatpush.bf16.msra.mxu0 0
      %1334 = vmatpush.bf16.msra.mxu0 0
      %1335 = vmatpush.bf16.msra.mxu0 0
      %1336 = vmatpush.bf16.msra.mxu0 0
      %1337 = vmatpush.bf16.msra.mxu0 %v1303
      %1338 = vmatmul.bf16.gmra.mxu0 %v1328
      %v1339 = vpop.f32.mrf.mxu0
      %v1340 = vadd.f32 0.0, %v1339
      %v1341 = vpop.f32.mrf.mxu0
      %v1342 = vadd.f32 0.0, %v1341
      %1343 = vdwg.mxu0
      %v1344 = vpack.c.bf16 %v1266, %v1266
      %v1345 = vpack.c.bf16 %v1268, %v1268
      %v1346 = vpack.c.bf16 %v1288, %v1288
      %v1347 = vpack.c.bf16 %v1290, %v1290
      %v1348 = vpack.c.bf16 %v1318, %v1318
      %v1349 = vpack.c.bf16 %v1320, %v1320
      %v1350 = vpack.c.bf16 %v1340, %v1340
      %v1351 = vpack.c.bf16 %v1342, %v1342
      %v1352 = vld [vmem:[%s546] sm:$0xf]
      %v1353 = vld [vmem:[%s546 + $0x4] sm:$0xf]
      %v1354 = vld [vmem:[%s546 + $0x8] sm:$0xf]
      %v1355 = vld [vmem:[%s546 + $0xc] sm:$0xf]
      %v1356 = vld [vmem:[%s546 + $0x10] sm:$0xf]
      %v1357 = vld [vmem:[%s546 + $0x14] sm:$0xf]
      %v1358 = vld [vmem:[%s546 + $0x18] sm:$0xf]
      %v1359 = vld [vmem:[%s546 + $0x1c] sm:$0xf]
      %v1360 = vld [vmem:[%s546 + $0x20] sm:$0xf]
      %v1361 = vld [vmem:[%s546 + $0x24] sm:$0xf]
      %v1362 = vld [vmem:[%s546 + $0x28] sm:$0xf]
      %v1363 = vld [vmem:[%s546 + $0x2c] sm:$0xf]
      %v1364 = vld [vmem:[%s546 + $0x30] sm:$0xf]
      %v1365 = vld [vmem:[%s546 + $0x34] sm:$0xf]
      %v1366 = vld [vmem:[%s546 + $0x38] sm:$0xf]
      %v1367 = vld [vmem:[%s546 + $0x3c] sm:$0xf]
      %v1370 = vunpack.c.l.b16 %v1344
      %v1371 = vunpack.c.l.b16 %v1345
      %v1372 = vpack.c.b16 %v1371, %v1370
      %v1377 = vunpack.c.l.b16 %v1352
      %v1378 = vunpack.c.l.b16 %v1353
      %v1379 = vunpack.c.l.b16 %v1354
      %v1380 = vunpack.c.l.b16 %v1355
      %v1381 = vpack.c.b16 %v1378, %v1377
      %v1382 = vpack.c.b16 %v1380, %v1379
      %v1386 = vsel %vm1048, %v1372, 0
      %1388 = vmatpush.bf16.msra.mxu0 0
      %1389 = vmatpush.bf16.msra.mxu0 0
      %1390 = vmatpush.bf16.msra.mxu0 0
      %1391 = vmatpush.bf16.msra.mxu0 0
      %1392 = vmatpush.bf16.msra.mxu0 0
      %1393 = vmatpush.bf16.msra.mxu0 0
      %1394 = vmatpush.bf16.msra.mxu0 %v1382
      %1395 = vmatpush.bf16.msra.mxu0 %v1381
      %1396 = vmatmul.bf16.gmra.mxu0 %v1386
      %v1397 = vpop.f32.mrf.mxu0
      %v1398 = vadd.f32 0.0, %v1397
      %v1399 = vpop.f32.mrf.mxu0
      %v1400 = vadd.f32 0.0, %v1399
      %1401 = vdwg.mxu0
      %v1404 = vunpack.c.l.b16 %v1346
      %v1405 = vunpack.c.l.b16 %v1347
      %v1406 = vpack.c.b16 %v1405, %v1404
      %v1411 = vunpack.c.l.b16 %v1356
      %v1412 = vunpack.c.l.b16 %v1357
      %v1413 = vunpack.c.l.b16 %v1358
      %v1414 = vunpack.c.l.b16 %v1359
      %v1415 = vpack.c.b16 %v1412, %v1411
      %v1416 = vpack.c.b16 %v1414, %v1413
      %v1420 = vsel %vm1048, %v1406, 0
      %1422 = vmatpush.bf16.msra.mxu0 0
      %1423 = vmatpush.bf16.msra.mxu0 0
      %1424 = vmatpush.bf16.msra.mxu0 0
      %1425 = vmatpush.bf16.msra.mxu0 0
      %1426 = vmatpush.bf16.msra.mxu0 0
      %1427 = vmatpush.bf16.msra.mxu0 0
      %1428 = vmatpush.bf16.msra.mxu0 %v1416
      %1429 = vmatpush.bf16.msra.mxu0 %v1415
      %1430 = vmatmul.bf16.gmra.mxu0 %v1420
      %v1431 = vpop.f32.mrf.mxu0
      %v1432 = vadd.f32 0.0, %v1431
      %v1433 = vpop.f32.mrf.mxu0
      %v1434 = vadd.f32 0.0, %v1433
      %1435 = vdwg.mxu0
      %v1438 = vunpack.c.l.b16 %v1348
      %v1439 = vunpack.c.l.b16 %v1349
      %v1440 = vpack.c.b16 %v1439, %v1438
      %v1445 = vunpack.c.l.b16 %v1360
      %v1446 = vunpack.c.l.b16 %v1361
      %v1447 = vunpack.c.l.b16 %v1362
      %v1448 = vunpack.c.l.b16 %v1363
      %v1449 = vpack.c.b16 %v1446, %v1445
      %v1450 = vpack.c.b16 %v1448, %v1447
      %v1454 = vsel %vm1048, %v1440, 0
      %1456 = vmatpush.bf16.msra.mxu0 0
      %1457 = vmatpush.bf16.msra.mxu0 0
      %1458 = vmatpush.bf16.msra.mxu0 0
      %1459 = vmatpush.bf16.msra.mxu0 0
      %1460 = vmatpush.bf16.msra.mxu0 0
      %1461 = vmatpush.bf16.msra.mxu0 0
      %1462 = vmatpush.bf16.msra.mxu0 %v1450
      %1463 = vmatpush.bf16.msra.mxu0 %v1449
      %1464 = vmatmul.bf16.gmra.mxu0 %v1454
      %v1465 = vpop.f32.mrf.mxu0
      %v1466 = vadd.f32 0.0, %v1465
      %v1467 = vpop.f32.mrf.mxu0
      %v1468 = vadd.f32 0.0, %v1467
      %1469 = vdwg.mxu0
      %v1472 = vunpack.c.l.b16 %v1350
      %v1473 = vunpack.c.l.b16 %v1351
      %v1474 = vpack.c.b16 %v1473, %v1472
      %v1479 = vunpack.c.l.b16 %v1364
      %v1480 = vunpack.c.l.b16 %v1365
      %v1481 = vunpack.c.l.b16 %v1366
      %v1482 = vunpack.c.l.b16 %v1367
      %v1483 = vpack.c.b16 %v1480, %v1479
      %v1484 = vpack.c.b16 %v1482, %v1481
      %v1488 = vsel %vm1048, %v1474, 0
      %1490 = vmatpush.bf16.msra.mxu0 0
      %1491 = vmatpush.bf16.msra.mxu0 0
      %1492 = vmatpush.bf16.msra.mxu0 0
      %1493 = vmatpush.bf16.msra.mxu0 0
      %1494 = vmatpush.bf16.msra.mxu0 0
      %1495 = vmatpush.bf16.msra.mxu0 0
      %1496 = vmatpush.bf16.msra.mxu0 %v1484
      %1497 = vmatpush.bf16.msra.mxu0 %v1483
      %1498 = vmatmul.bf16.gmra.mxu0 %v1488
      %v1499 = vpop.f32.mrf.mxu0
      %v1500 = vadd.f32 0.0, %v1499
      %v1501 = vpop.f32.mrf.mxu0
      %v1502 = vadd.f32 0.0, %v1501
      %1503 = vdwg.mxu0
      %v1504 = vsel %vm572, %v1398, 0.0
      %v1505 = vsel %vm572, %v1432, 0.0
      %v1506 = vadd.f32 %v1504, %v1505
      %v1507 = vsel %vm572, %v1466, 0.0
      %v1508 = vadd.f32 %v1506, %v1507
      %v1509 = vsel %vm572, %v1500, 0.0
      %v1510 = vadd.f32 %v1508, %v1509
      %v1511 = vsel %vm572, %v1400, 0.0
      %v1512 = vsel %vm572, %v1434, 0.0
      %v1513 = vadd.f32 %v1511, %v1512
      %v1514 = vsel %vm572, %v1468, 0.0
      %v1515 = vadd.f32 %v1513, %v1514
      %v1516 = vsel %vm572, %v1502, 0.0
      %v1517 = vadd.f32 %v1515, %v1516
      %v1518 = vadd.f32 %v567, %v1510
      %v1519 = vadd.f32 %v568, %v1517
      %v1520 = vmul.f32 %v1518, %v1518
      %v1521 = vmul.f32 %v1519, %v1519
      %v1522 = vsel %vm572, %v1520, 0.0
      %1523 = vadd.xlane.f32.xlu0 %v1522
      %v1524 = vpop.xlane.xlu0 %1523
      %v1525 = vsel %vm572, %v1521, 0.0
      %1526 = vadd.xlane.f32.xlu0 %v1525
      %v1527 = vpop.xlane.xlu0 %1526
      %v1528 = vmul.f32 %v1524, %v585
      %v1529 = vmul.f32 %v1527, %v585
      %v1530 = vadd.f32 %v1528, 1e-06
      %v1531 = vadd.f32 %v1529, 1e-06
      %v1532 = vrsqrt.pop %v1530
      %v1533 = vmul.f32 %v1532, %v1530
      %v1534 = vmul.f32 %v1533, %v1532
      %v1535 = vmul.f32 0.5, %v1534
      %v1536 = vsub.f32 1.5, %v1535
      %v1537 = vmul.f32 %v1532, %v1536
      %vm1538 = vweird.f32 %v1530
      %vm1539 = vweird.f32 %v1532
      %vm1540 = vmor %vm1538, %vm1539
      %v1541 = vsel %vm1540, %v1532, %v1537
      %v1542 = vrsqrt.pop %v1531
      %v1543 = vmul.f32 %v1542, %v1531
      %v1544 = vmul.f32 %v1543, %v1542
      %v1545 = vmul.f32 0.5, %v1544
      %v1546 = vsub.f32 1.5, %v1545
      %v1547 = vmul.f32 %v1542, %v1546
      %vm1548 = vweird.f32 %v1531
      %vm1549 = vweird.f32 %v1542
      %vm1550 = vmor %vm1548, %vm1549
      %v1551 = vsel %vm1550, %v1542, %v1547
      %v1552 = vmul.f32 %v1518, %v1541
      %v1553 = vmul.f32 %v1519, %v1551
      %v1554 = vperm.slane %v569, 1
      %v1555 = vmul.f32 %v1552, %v1554
      %v1556 = vmul.f32 %v1553, %v1554
      %v1557 = vpack.c.bf16 %v1556, %v1555
      %v1558 = vld [vmem:[%s551] sm:$0xff]
      %v1559 = vld [vmem:[%s551 + $0x8] sm:$0xff]
      %v1560 = vld [vmem:[%s551 + $0x10] sm:$0xff]
      %v1561 = vld [vmem:[%s551 + $0x18] sm:$0xff]
      %v1562 = vld [vmem:[%s551 + $0x20] sm:$0xff]
      %v1563 = vld [vmem:[%s551 + $0x28] sm:$0xff]
      %v1564 = vld [vmem:[%s551 + $0x30] sm:$0xff]
      %v1565 = vld [vmem:[%s551 + $0x38] sm:$0xff]
      %v1574 = vunpack.c.l.b16 %v1558
      %v1575 = vunpack.c.h.b16 %v1558
      %v1576 = vunpack.c.l.b16 %v1559
      %v1577 = vunpack.c.h.b16 %v1559
      %v1578 = vunpack.c.l.b16 %v1560
      %v1579 = vunpack.c.h.b16 %v1560
      %v1580 = vunpack.c.l.b16 %v1561
      %v1581 = vunpack.c.h.b16 %v1561
      %v1582 = vunpack.c.l.b16 %v1562
      %v1583 = vunpack.c.h.b16 %v1562
      %v1584 = vunpack.c.l.b16 %v1563
      %v1585 = vunpack.c.h.b16 %v1563
      %v1586 = vunpack.c.l.b16 %v1564
      %v1587 = vunpack.c.h.b16 %v1564
      %v1588 = vunpack.c.l.b16 %v1565
      %v1589 = vunpack.c.h.b16 %v1565
      %v1590 = vpack.c.b16 %v1576, %v1574
      %v1591 = vpack.c.b16 %v1577, %v1575
      %v1592 = vpack.c.b16 %v1580, %v1578
      %v1593 = vpack.c.b16 %v1581, %v1579
      %v1594 = vpack.c.b16 %v1584, %v1582
      %v1595 = vpack.c.b16 %v1585, %v1583
      %v1596 = vpack.c.b16 %v1588, %v1586
      %v1597 = vpack.c.b16 %v1589, %v1587
      %v1607 = vsel %vm572, %v1557, 0
      %1609 = vmatpush.bf16.msra.mxu0 0
      %1610 = vmatpush.bf16.msra.mxu0 0
      %1611 = vmatpush.bf16.msra.mxu0 0
      %1612 = vmatpush.bf16.msra.mxu0 0
      %1613 = vmatpush.bf16.msra.mxu0 %v1596
      %1614 = vmatpush.bf16.msra.mxu0 %v1594
      %1615 = vmatpush.bf16.msra.mxu0 %v1592
      %1616 = vmatpush.bf16.msra.mxu0 %v1590
      %1617 = vmatmul.bf16.gmra.mxu0 %v1607
      %v1618 = vpop.f32.mrf.mxu0
      %v1619 = vadd.f32 0.0, %v1618
      %v1620 = vpop.f32.mrf.mxu0
      %v1621 = vadd.f32 0.0, %v1620
      %1622 = vdwg.mxu0
      %1623 = vmatpush.bf16.msra.mxu0 0
      %1624 = vmatpush.bf16.msra.mxu0 0
      %1625 = vmatpush.bf16.msra.mxu0 0
      %1626 = vmatpush.bf16.msra.mxu0 0
      %1627 = vmatpush.bf16.msra.mxu0 %v1597
      %1628 = vmatpush.bf16.msra.mxu0 %v1595
      %1629 = vmatpush.bf16.msra.mxu0 %v1593
      %1630 = vmatpush.bf16.msra.mxu0 %v1591
      %1631 = vmatmul.bf16.gmra.mxu0 %v1607
      %v1632 = vpop.f32.mrf.mxu0
      %v1633 = vadd.f32 0.0, %v1632
      %v1634 = vpop.f32.mrf.mxu0
      %v1635 = vadd.f32 0.0, %v1634
      %1636 = vdwg.mxu0
      %v1637 = vsub.f32 0.0, %v1619
      %v1638 = vsub.f32 0.0, %v1621
      %v1639 = vmul.f32 %v1637, 1.442695
      %v1640 = vpow.pop %v1639
      %v1641 = vmul.f32 %v1638, 1.442695
      %v1642 = vpow.pop %v1641
      %v1643 = vadd.f32 %v1640, 1.0
      %v1644 = vadd.f32 %v1642, 1.0
      %v1645 = vrcp.pop %v1643
      %v1646 = vmul.f32 %v1643, %v1645
      %v1647 = vsub.f32 1.0, %v1646
      %v1648 = vmul.f32 %v1645, %v1647
      %v1649 = vadd.f32 %v1645, %v1648
      %vm1650 = vweird.f32 %v1643
      %vm1651 = vweird.f32 %v1645
      %vm1652 = vmor %vm1650, %vm1651
      %v1653 = vsel %vm1652, %v1645, %v1649
      %v1654 = vand.u32 2147483647, %v1643
      %vm1655 = vcmp.eq.f32.partialorder %v1654, 8.507059e+37
      %v1656 = vand.u32 %v1643, 2147483648
      %v1657 = vor.u32 1.1754944e-38, %v1656
      %v1658 = vsel %vm1655, %v1657, %v1653
      %v1659 = vmul.f32 1.0, %v1658
      %v1660 = vrcp.pop %v1644
      %v1661 = vmul.f32 %v1644, %v1660
      %v1662 = vsub.f32 1.0, %v1661
      %v1663 = vmul.f32 %v1660, %v1662
      %v1664 = vadd.f32 %v1660, %v1663
      %vm1665 = vweird.f32 %v1644
      %vm1666 = vweird.f32 %v1660
      %vm1667 = vmor %vm1665, %vm1666
      %v1668 = vsel %vm1667, %v1660, %v1664
      %v1669 = vand.u32 2147483647, %v1644
      %vm1670 = vcmp.eq.f32.partialorder %v1669, 8.507059e+37
      %v1671 = vand.u32 %v1644, 2147483648
      %v1672 = vor.u32 1.1754944e-38, %v1671
      %v1673 = vsel %vm1670, %v1672, %v1668
      %v1674 = vmul.f32 1.0, %v1673
      %v1675 = vmul.f32 %v1619, %v1659
      %v1676 = vmul.f32 %v1621, %v1674
      %v1677 = vmul.f32 %v1675, %v1633
      %v1678 = vmul.f32 %v1676, %v1635
      %v1679 = vpack.c.bf16 %v1678, %v1677
      %v1680 = vld [vmem:[%s556] sm:$0xf]
      %v1681 = vld [vmem:[%s556 + $0x4] sm:$0xf]
      %v1682 = vld [vmem:[%s556 + $0x8] sm:$0xf]
      %v1683 = vld [vmem:[%s556 + $0xc] sm:$0xf]
      %v1684 = vld [vmem:[%s556 + $0x10] sm:$0xf]
      %v1685 = vld [vmem:[%s556 + $0x14] sm:$0xf]
      %v1686 = vld [vmem:[%s556 + $0x18] sm:$0xf]
      %v1687 = vld [vmem:[%s556 + $0x1c] sm:$0xf]
      %v1688 = vld [vmem:[%s556 + $0x20] sm:$0xf]
      %v1689 = vld [vmem:[%s556 + $0x24] sm:$0xf]
      %v1690 = vld [vmem:[%s556 + $0x28] sm:$0xf]
      %v1691 = vld [vmem:[%s556 + $0x2c] sm:$0xf]
      %v1692 = vld [vmem:[%s556 + $0x30] sm:$0xf]
      %v1693 = vld [vmem:[%s556 + $0x34] sm:$0xf]
      %v1694 = vld [vmem:[%s556 + $0x38] sm:$0xf]
      %v1695 = vld [vmem:[%s556 + $0x3c] sm:$0xf]
      %v1712 = vunpack.c.l.b16 %v1680
      %v1713 = vunpack.c.l.b16 %v1681
      %v1714 = vunpack.c.l.b16 %v1682
      %v1715 = vunpack.c.l.b16 %v1683
      %v1716 = vunpack.c.l.b16 %v1684
      %v1717 = vunpack.c.l.b16 %v1685
      %v1718 = vunpack.c.l.b16 %v1686
      %v1719 = vunpack.c.l.b16 %v1687
      %v1720 = vunpack.c.l.b16 %v1688
      %v1721 = vunpack.c.l.b16 %v1689
      %v1722 = vunpack.c.l.b16 %v1690
      %v1723 = vunpack.c.l.b16 %v1691
      %v1724 = vunpack.c.l.b16 %v1692
      %v1725 = vunpack.c.l.b16 %v1693
      %v1726 = vunpack.c.l.b16 %v1694
      %v1727 = vunpack.c.l.b16 %v1695
      %v1728 = vpack.c.b16 %v1713, %v1712
      %v1729 = vpack.c.b16 %v1715, %v1714
      %v1730 = vpack.c.b16 %v1717, %v1716
      %v1731 = vpack.c.b16 %v1719, %v1718
      %v1732 = vpack.c.b16 %v1721, %v1720
      %v1733 = vpack.c.b16 %v1723, %v1722
      %v1734 = vpack.c.b16 %v1725, %v1724
      %v1735 = vpack.c.b16 %v1727, %v1726
      %1744 = vmatpush.bf16.msra.mxu0 %v1735
      %1745 = vmatpush.bf16.msra.mxu0 %v1734
      %1746 = vmatpush.bf16.msra.mxu0 %v1733
      %1747 = vmatpush.bf16.msra.mxu0 %v1732
      %1748 = vmatpush.bf16.msra.mxu0 %v1731
      %1749 = vmatpush.bf16.msra.mxu0 %v1730
      %1750 = vmatpush.bf16.msra.mxu0 %v1729
      %1751 = vmatpush.bf16.msra.mxu0 %v1728
      %1752 = vmatmul.bf16.gmra.mxu0 %v1679
      %v1753 = vpop.f32.mrf.mxu0
      %v1754 = vadd.f32 0.0, %v1753
      %v1755 = vpop.f32.mrf.mxu0
      %v1756 = vadd.f32 0.0, %v1755
      %1757 = vdwg.mxu0
      %v1758 = vadd.f32 %v1518, %v1754
      %v1759 = vadd.f32 %v1519, %v1756
      %1760 = vst.msk [vmem:[#allocation2] sm:$0xff] %vm572, %v1758
      %1761 = vst.msk [vmem:[#allocation2 + $0x8] sm:$0xff] %vm572, %v1759
      %p1762 = scmp.eq.s32.totalorder %s26, 1
      // Predicated region
      $region85: #{qwen3_forward.2} parent=79 // pred_check
        %p1763 = pneg %p1762
      $region86: #{qwen3_forward.2} parent=79 // pred_check_branch
        %1765 = sbr.rel (%p1763) target = $region88
      $region87: #{qwen3_forward.2} parent=79 // pred_region
        %1766 = vst.msk [vmem:[%s15] sm:$0xff] %vm572, %v1758
        %1767 = vst.msk [vmem:[%s15 + $0x8] sm:$0xff] %vm572, %v1759
      $region88: #{qwen3_forward.2} parent=79 // pred_fallthru
        _
      // Predicated region
      $region89: #{qwen3_forward.2} parent=79 // pred_check
        %p1768 = pneg %p379
      $region90: #{qwen3_forward.2} parent=79 // pred_check_branch
        %1770 = sbr.rel (%p1768) target = $region92
      $region91: #{qwen3_forward.2} parent=79 // pred_region
        _
      $region92: #{qwen3_forward.2} parent=79 // pred_fallthru
        _
      // Predicated region
      $region93: #{qwen3_forward.2} parent=79 // pred_check
        %p1771 = pneg %p379
      $region94: #{qwen3_forward.2} parent=79 // pred_check_branch
        %1773 = sbr.rel (%p1771) target = $region96
      $region95: #{qwen3_forward.2} parent=79 // pred_region
        _
      $region96: #{qwen3_forward.2} parent=79 // pred_fallthru
        _
    $region80: #{qwen3_forward.2} parent=5 // pred_fallthru
      _
    %p1774 = scmp.le.s32.totalorder 2, %s21
    // Predicated region
    $region97: #{qwen3_forward.2} parent=5 // pred_check
      %p1775 = pneg %p1774
    $region98: #{qwen3_forward.2} parent=5 // pred_check_branch
      %1777 = sbr.rel (%p1775) target = $region100
    $region99: #{qwen3_forward.2} parent=5 // pred_region
      %s1778 = ssub.s32 %s21, 2
    $region100: #{qwen3_forward.2} parent=5 // pred_fallthru
      _
  $region6: #{qwen3_forward.2} parent=0 // loop_footer
    %s25 = sadd.s32 1, %s21
  $region7: #{qwen3_forward.2} parent=0 // loop_footer_branch
    %20 = sbr.rel target = $region3
  $region8: #{qwen3_forward.2} parent=0 // loop_exit
    _

</llo_original>
